<compile_context>
chip_gen: v6e
topology: v6e:2x2x1
jax: 0.10.0
libtpu: 0.0.40
codegen_flags: <defaults>
</compile_context>

<pallas_src>
import functools

import jax
import jax.numpy as jnp
from jax.experimental import pallas as pl
from jax.experimental.pallas import tpu as pltpu

# ---------------------------------------------------------------------------
# model hyper-parameters (small, consistent with the module's __init__)
# ---------------------------------------------------------------------------
HIDDEN = 32          # transformer.d_model
NUM_CLASSES = 10     # -> class heads output num_classes + 1 = 11
NUM_ENTITIES = 8     # entity queries (== NUM_TRIPLETS, required by head pack)
NUM_TRIPLETS = 8     # triplet queries
NUM_DEC_LAYERS = 3   # stacked decoder outputs (leading dim of hs / hs_t)
C_BACKBONE = 8       # backbone.num_channels
HEAD_PACK = 64       # per-head lane padding; 2*HEAD_PACK = 128 lane-dense out

assert NUM_ENTITIES == NUM_TRIPLETS, "fused heads kernel packs equal-size branches"


# ---------------------------------------------------------------------------
# kernel 1: fused backbone + input_proj + pos-add + mem-mean + so_masks
# ---------------------------------------------------------------------------
def _encode_kernel(x_ref, pos_ref, qso_ref, bwT_ref, bb_ref, pwT_ref, pb_ref,
                   mem_ref, so_ref, *, scale):
    """One batch element per grid step, everything in channels-major (D, HW)
    layout so matmul outputs and the so_masks store are lane-dense."""
    x = x_ref[0]                                                  # (3, HW) f32

    # backbone stand-in: 1x1 conv + relu (kept f32: K=3, bf16 saves nothing)
    # TODO(synk): the real backbone is an external ResNet; not reproduced here.
    feat = jnp.dot(bwT_ref[...], x,
                   preferred_element_type=jnp.float32) + bb_ref[...]
    feat = jnp.maximum(feat, 0.0)                                 # (C, HW)

    # RelTR.input_proj: Conv2d(C_BACKBONE, D, kernel_size=1)  (bf16 MXU, f32 acc)
    src = jnp.dot(pwT_ref[...].astype(jnp.bfloat16),
                  feat.astype(jnp.bfloat16),
                  preferred_element_type=jnp.float32) + pb_ref[...]
    memory = src + pos_ref[0]                                     # (D, HW) f32

    # per-batch mean over spatial positions (cross-lane reduce -> XLU slot)
    mem_ref[0] = jnp.sum(memory, axis=1, keepdims=True) * (1.0 / memory.shape[1])

    # so_masks: sigmoid(scale * q @ memory). memory is already (D, HW), so this
    # is a plain (NQ, D) @ (D, HW) dot and the (NQ, HW) store is lane-dense.
    logits = jnp.dot(qso_ref[...].astype(jnp.bfloat16),
                     memory.astype(jnp.bfloat16),
                     preferred_element_type=jnp.float32) * scale
    so_ref[0] = jax.nn.sigmoid(logits)


def pallas_encode(x, pos_t, q_so, bwT, bb, pwT, pb):
    """x: (B, 3, HW) image slab, pos_t: (B, D, HW), q_so: (2*NT, D).
    Returns mem_mean (B, D, 1) and so_masks (B, 2*NT, HW)."""
    B, CIN, HW = x.shape
    D, C = pwT.shape
    NQ = q_so.shape[0]
    scale = 1.0 / (D ** 0.5)
    return pl.pallas_call(
        functools.partial(_encode_kernel, scale=scale),
        out_shape=(jax.ShapeDtypeStruct((B, D, 1), jnp.float32),
                   jax.ShapeDtypeStruct((B, NQ, HW), jnp.float32)),
        grid_spec=pltpu.PrefetchScalarGridSpec(
            num_scalar_prefetch=0,
            grid=(B,),
            in_specs=[
                pl.BlockSpec((1, CIN, HW), lambda b: (b, 0, 0)),
                pl.BlockSpec((1, D, HW), lambda b: (b, 0, 0)),
                pl.BlockSpec((NQ, D), lambda b: (0, 0)),
                pl.BlockSpec((C, CIN), lambda b: (0, 0)),
                pl.BlockSpec((C, 1), lambda b: (0, 0)),
                pl.BlockSpec((D, C), lambda b: (0, 0)),
                pl.BlockSpec((D, 1), lambda b: (0, 0)),
            ],
            out_specs=[
                pl.BlockSpec((1, D, 1), lambda b: (b, 0, 0)),
                pl.BlockSpec((1, NQ, HW), lambda b: (b, 0, 0)),
            ],
        ),
        compiler_params=pltpu.CompilerParams(
            dimension_semantics=("parallel",)),
    )(x, pos_t, q_so, bwT, bb, pwT, pb)


# ---------------------------------------------------------------------------
# kernel 2: fused decoder stand-in (all 3*L matmuls + tanh/mem-mean add)
# ---------------------------------------------------------------------------
def _decode_kernel(entq_ref, subq_ref, objq_ref, mem_ref,
                   ew_ref, eb_ref, sw_ref, sb_ref, ow_ref, ob_ref,
                   hs_ref, hst_ref):
    """One decoder layer per grid step; 3 tiny matmuls + batch mixing."""
    def mix(q_ref, w_ref, b_ref):
        return jnp.dot(q_ref[...].astype(jnp.bfloat16),
                       w_ref[0].astype(jnp.bfloat16),
                       preferred_element_type=jnp.float32) + b_ref[0]

    e_f = mix(entq_ref, ew_ref, eb_ref)        # (NE, D)
    s_f = mix(subq_ref, sw_ref, sb_ref)        # (NT, D)
    o_f = mix(objq_ref, ow_ref, ob_ref)        # (NT, D)

    B = mem_ref.shape[0]
    for b in range(B):                         # static unroll, B is tiny
        m_b = mem_ref[b:b + 1, :]              # (1, D) sublane-broadcast
        hs_ref[0, b] = jnp.tanh(e_f + m_b)
        hst_ref[0, b] = jnp.concatenate(
            [jnp.tanh(s_f + m_b), jnp.tanh(o_f + m_b)], axis=-1)


def pallas_decode(ent_q, sub_q, obj_q, mem_mean, ew, eb, sw, sb, ow, ob):
    L, D, _ = ew.shape
    NE = ent_q.shape[0]
    NT = sub_q.shape[0]
    B = mem_mean.shape[0]
    return pl.pallas_call(
        _decode_kernel,
        out_shape=(jax.ShapeDtypeStruct((L, B, NE, D), jnp.float32),
                   jax.ShapeDtypeStruct((L, B, NT, 2 * D), jnp.float32)),
        grid_spec=pltpu.PrefetchScalarGridSpec(
            num_scalar_prefetch=0,
            grid=(L,),
            in_specs=[
                pl.BlockSpec((NE, D), lambda l: (0, 0)),
                pl.BlockSpec((NT, D), lambda l: (0, 0)),
                pl.BlockSpec((NT, D), lambda l: (0, 0)),
                pl.BlockSpec((B, D), lambda l: (0, 0)),
                pl.BlockSpec((1, D, D), lambda l: (l, 0, 0)),
                pl.BlockSpec((1, 1, D), lambda l: (l, 0, 0)),
                pl.BlockSpec((1, D, D), lambda l: (l, 0, 0)),
                pl.BlockSpec((1, 1, D), lambda l: (l, 0, 0)),
                pl.BlockSpec((1, D, D), lambda l: (l, 0, 0)),
                pl.BlockSpec((1, 1, D), lambda l: (l, 0, 0)),
            ],
            out_specs=[
                pl.BlockSpec((1, B, NE, D), lambda l: (l, 0, 0, 0)),
                pl.BlockSpec((1, B, NT, 2 * D), lambda l: (l, 0, 0, 0)),
            ],
        ),
        compiler_params=pltpu.CompilerParams(
            dimension_semantics=("parallel",)),
    )(ent_q, sub_q, obj_q, mem_mean, ew, eb, sw, sb, ow, ob)


# ---------------------------------------------------------------------------
# kernel 3: fused prediction heads (class linear + 3-layer bbox MLP + sigmoid)
# ---------------------------------------------------------------------------
def _heads_kernel(q_ref, wc_ref, bc_ref, w1_ref, b1_ref, w2_ref, b2_ref,
                  w3_ref, b3_ref, o_ref):
    """One branch (entity / sub / obj) per grid step.  Class logits (padded to
    64 lanes) and bbox outputs (padded to 64 lanes) are packed into a single
    128-lane output slab so the store is unmasked."""
    x = q_ref[0].astype(jnp.bfloat16)                              # (M, D)
    logits = jnp.dot(x, wc_ref[0].astype(jnp.bfloat16),
                     preferred_element_type=jnp.float32) + bc_ref[0]   # (M, 64)
    h = jnp.dot(x, w1_ref[0].astype(jnp.bfloat16),
                preferred_element_type=jnp.float32) + b1_ref[0]
    h = jnp.maximum(h, 0.0)
    h = jnp.dot(h.astype(jnp.bfloat16), w2_ref[0].astype(jnp.bfloat16),
                preferred_element_type=jnp.float32) + b2_ref[0]
    h = jnp.maximum(h, 0.0)
    box = jnp.dot(h.astype(jnp.bfloat16), w3_ref[0].astype(jnp.bfloat16),
                  preferred_element_type=jnp.float32) + b3_ref[0]      # (M, 64)
    box = jax.nn.sigmoid(box)
    o_ref[0] = jnp.concatenate([logits, box], axis=-1)             # (M, 128)


def pallas_heads(q, wc, bc, w1, b1, w2, b2, w3, b3):
    """q: (3, M, D) stacked last-layer queries.  Returns (3, M, 128)."""
    BR, M, D = q.shape
    P = wc.shape[2]
    return pl.pallas_call(
        _heads_kernel,
        out_shape=jax.ShapeDtypeStruct((BR, M, 2 * P), jnp.float32),
        grid_spec=pltpu.PrefetchScalarGridSpec(
            num_scalar_prefetch=0,
            grid=(BR,),
            in_specs=[
                pl.BlockSpec((1, M, D), lambda r: (r, 0, 0)),
                pl.BlockSpec((1, D, P), lambda r: (r, 0, 0)),
                pl.BlockSpec((1, 1, P), lambda r: (r, 0, 0)),
                pl.BlockSpec((1, D, D), lambda r: (r, 0, 0)),
                pl.BlockSpec((1, 1, D), lambda r: (r, 0, 0)),
                pl.BlockSpec((1, D, D), lambda r: (r, 0, 0)),
                pl.BlockSpec((1, 1, D), lambda r: (r, 0, 0)),
                pl.BlockSpec((1, D, P), lambda r: (r, 0, 0)),
                pl.BlockSpec((1, 1, P), lambda r: (r, 0, 0)),
            ],
            out_specs=pl.BlockSpec((1, M, 2 * P), lambda r: (r, 0, 0)),
        ),
        compiler_params=pltpu.CompilerParams(
            dimension_semantics=("parallel",)),
    )(q, wc, bc, w1, b1, w2, b2, w3, b3)


# ---------------------------------------------------------------------------
# glue: deterministic parameter init, positional embedding, forward
# ---------------------------------------------------------------------------
def init_params(key):
    D, L = HIDDEN, NUM_DEC_LAYERS
    NC1 = NUM_CLASSES + 1

    keys = iter(jax.random.split(key, 64))

    def w(shape, scale=0.1):
        return scale * jax.random.normal(next(keys), shape, jnp.float32)

    p = {
        # backbone stand-in (1x1 conv, 3 -> C_BACKBONE)
        "backbone_w": w((3, C_BACKBONE)), "backbone_b": w((1, C_BACKBONE)),
        # RelTR.input_proj : Conv2d(backbone.num_channels, hidden_dim, 1)
        "proj_w": w((C_BACKBONE, D)), "proj_b": w((1, D)),
        # embeddings
        "entity_embed": w((NUM_ENTITIES, 2 * D)),
        "triplet_embed": w((NUM_TRIPLETS, 3 * D)),
        "so_embed": w((2, D)),
        # transformer stand-in per-layer mixing weights
        "dec_e_w": w((L, D, D)), "dec_e_b": w((L, 1, D)),
        "dec_s_w": w((L, D, D)), "dec_s_b": w((L, 1, D)),
        "dec_o_w": w((L, D, D)), "dec_o_b": w((L, 1, D)),
        # class heads
        "ent_cls_w": w((D, NC1)), "ent_cls_b": w((1, NC1)),
        "sub_cls_w": w((D, NC1)), "sub_cls_b": w((1, NC1)),
        "obj_cls_w": w((D, NC1)), "obj_cls_b": w((1, NC1)),
    }
    # bbox MLP heads (hidden_dim, hidden_dim, 4, 3 layers)
    for prefix in ("ent_bbox", "sub_bbox", "obj_bbox"):
        p[prefix + "_w1"] = w((D, D)); p[prefix + "_b1"] = w((1, D))
        p[prefix + "_w2"] = w((D, D)); p[prefix + "_b2"] = w((1, D))
        p[prefix + "_w3"] = w((D, 4)); p[prefix + "_b3"] = w((1, 4))
    return p


def sine_pos_embed(B, H, W, D):
    """DETR-style sinusoidal positional embedding -> (B, H*W, D)."""
    num_feats = D // 2
    y = jnp.arange(H, dtype=jnp.float32) + 1.0
    x = jnp.arange(W, dtype=jnp.float32) + 1.0
    dim_t = 10000.0 ** (2.0 * (jnp.arange(num_feats) // 2) / num_feats)
    pos_x = x[:, None] / dim_t                      # (W, F)
    pos_y = y[:, None] / dim_t                      # (H, F)
    pos_x = jnp.stack([jnp.sin(pos_x[:, 0::2]), jnp.cos(pos_x[:, 1::2])],
                      axis=2).reshape(W, num_feats)
    pos_y = jnp.stack([jnp.sin(pos_y[:, 0::2]), jnp.cos(pos_y[:, 1::2])],
                      axis=2).reshape(H, num_feats)
    pos = jnp.concatenate(
        [jnp.broadcast_to(pos_y[:, None, :], (H, W, num_feats)),
         jnp.broadcast_to(pos_x[None, :, :], (H, W, num_feats))], axis=-1)
    return jnp.broadcast_to(pos[None], (B, H, W, D)).reshape(B, H * W, D)


def reltr_forward(p, images, mask):
    B, _, H, W = images.shape
    h, w = mask.shape[-2], mask.shape[-1]
    D, L = HIDDEN, NUM_DEC_LAYERS
    HW = H * W
    NC1 = NUM_CLASSES + 1
    # TODO(synk): mask is accepted but unused — the stand-in encoder applies no
    # padding masking (real RelTR transformer would).

    # ----- query / embedding prep (tiny, done in XLA) -----------------------
    ent = p["entity_embed"]                                   # (NE, 2D)
    ent_q = ent[:, :D] + ent[:, D:]                           # (NE, D)
    trip = p["triplet_embed"]                                 # (NT, 3D)
    so = p["so_embed"]                                        # (2, D)
    sub_in = trip[:, :D] + so[0][None, :]                     # (NT, D)
    obj_in = trip[:, D:2 * D] + so[1][None, :]                # (NT, D)
    ctx = trip[:, 2 * D:]                                     # (NT, D)
    sub_q = sub_in + ctx
    obj_q = obj_in + ctx
    q_so = jnp.concatenate(
        [sub_in[:, None, :], obj_in[:, None, :]], axis=1
    ).reshape(NUM_TRIPLETS * 2, D)

    # ----- fused backbone + input_proj + pos + mem-mean + so_masks ----------
    # NCHW reshapes directly to a channels-major (B, 3, HW) slab: no transpose.
    x = images.reshape(B, 3, HW)
    pos_t = jnp.transpose(sine_pos_embed(B, H, W, D), (0, 2, 1))   # (B, D, HW)
    mem_mean, so_masks = pallas_encode(
        x, pos_t, q_so,
        p["backbone_w"].T, p["backbone_b"].T,                  # (C,3), (C,1)
        p["proj_w"].T, p["proj_b"].T)                          # (D,C), (D,1)
    mem_mean = mem_mean[:, :, 0]                               # (B, D)

    # ----- fused decoder stand-in (all 3*L matmuls in one call) -------------
    # TODO(synk): the real RelTR encoder/decoder transformer is an external
    # module; this stand-in only reproduces the output contract (hs, hs_t).
    hs, hs_t = pallas_decode(
        ent_q, sub_q, obj_q, mem_mean,
        p["dec_e_w"], p["dec_e_b"],
        p["dec_s_w"], p["dec_s_b"],
        p["dec_o_w"], p["dec_o_b"])                            # (L,B,NE,D), (L,B,NT,2D)

    # ----- fused prediction heads, last decoder layer only (aux_loss=False) -
    hs_last = hs[-1]                                           # (B, NE, D)
    hs_sub_last = hs_t[-1, ..., :D]                            # torch.split
    hs_obj_last = hs_t[-1, ..., D:]
    q_stack = jnp.stack([hs_last.reshape(-1, D),
                         hs_sub_last.reshape(-1, D),
                         hs_obj_last.reshape(-1, D)])          # (3, B*NQ, D)

    def pad_n(wt):
        return jnp.pad(wt, ((0, 0), (0, HEAD_PACK - wt.shape[1])))

    wc = jnp.stack([pad_n(p["ent_cls_w"]), pad_n(p["sub_cls_w"]), pad_n(p["obj_cls_w"])])
    bc = jnp.stack([pad_n(p["ent_cls_b"]), pad_n(p["sub_cls_b"]), pad_n(p["obj_cls_b"])])
    w1 = jnp.stack([p["ent_bbox_w1"], p["sub_bbox_w1"], p["obj_bbox_w1"]])
    b1 = jnp.stack([p["ent_bbox_b1"], p["sub_bbox_b1"], p["obj_bbox_b1"]])
    w2 = jnp.stack([p["ent_bbox_w2"], p["sub_bbox_w2"], p["obj_bbox_w2"]])
    b2 = jnp.stack([p["ent_bbox_b2"], p["sub_bbox_b2"], p["obj_bbox_b2"]])
    w3 = jnp.stack([pad_n(p["ent_bbox_w3"]), pad_n(p["sub_bbox_w3"]), pad_n(p["obj_bbox_w3"])])
    b3 = jnp.stack([pad_n(p["ent_bbox_b3"]), pad_n(p["sub_bbox_b3"]), pad_n(p["obj_bbox_b3"])])

    head_out = pallas_heads(q_stack, wc, bc, w1, b1, w2, b2, w3, b3)
    head_out = head_out.reshape(3, B, -1, 2 * HEAD_PACK)       # (3, B, NQ, 128)

    out = {
        "pred_logits": head_out[0, :, :, :NC1],
        "pred_boxes":  head_out[0, :, :, HEAD_PACK:HEAD_PACK + 4],
        "sub_logits":  head_out[1, :, :, :NC1],
        "sub_boxes":   head_out[1, :, :, HEAD_PACK:HEAD_PACK + 4],
        "obj_logits":  head_out[2, :, :, :NC1],
        "obj_boxes":   head_out[2, :, :, HEAD_PACK:HEAD_PACK + 4],
    }
    # TODO(synk): aux_outputs (aux_loss=True) intentionally not emitted.

    so_masks = so_masks.reshape(B, NUM_TRIPLETS, 2, h, w)
    so_masks_out = so_masks.reshape(-1, 2, h, w)               # .view(-1, 2, h, w)
    return out, hs_t, so_masks_out


# ---------------------------------------------------------------------------
if __name__ == "__main__":
    key = jax.random.PRNGKey(0)
    k_param, k_img = jax.random.split(key)

    params = init_params(k_param)

    B, H, W = 2, 16, 16
    images = jax.random.normal(k_img, (B, 3, H, W), jnp.float32)   # NCHW
    mask = jnp.zeros((B, H, W), jnp.bool_)                          # no padding

    fwd = jax.jit(reltr_forward)
    out, hs_t, so_masks = fwd(params, images, mask)
    jax.block_until_ready((out, hs_t, so_masks))

    assert out["pred_logits"].shape == (B, NUM_ENTITIES, NUM_CLASSES + 1)
    assert out["pred_boxes"].shape == (B, NUM_ENTITIES, 4)
    assert out["sub_logits"].shape == (B, NUM_TRIPLETS, NUM_CLASSES + 1)
    assert out["sub_boxes"].shape == (B, NUM_TRIPLETS, 4)
    assert out["obj_logits"].shape == (B, NUM_TRIPLETS, NUM_CLASSES + 1)
    assert out["obj_boxes"].shape == (B, NUM_TRIPLETS, 4)
    assert hs_t.shape == (NUM_DEC_LAYERS, B, NUM_TRIPLETS, 2 * HIDDEN)
    assert so_masks.shape == (B * NUM_TRIPLETS, 2, H, W)
    assert bool(jnp.all((out["pred_boxes"] >= 0) & (out["pred_boxes"] <= 1)))

    print("KERNEL_OK")
</pallas_src>

<mosaic_0001>
module attributes {stable_mosaic.version = 11 : i64} {
  func.func @_encode_kernel(%arg0: i32, %arg1: memref<1x3x256xf32, #tpu.memory_space<vmem>>, %arg2: memref<1x32x256xf32, #tpu.memory_space<vmem>>, %arg3: memref<16x32xf32, #tpu.memory_space<vmem>>, %arg4: memref<8x3xf32, #tpu.memory_space<vmem>>, %arg5: memref<8x1xf32, #tpu.memory_space<vmem>>, %arg6: memref<32x8xf32, #tpu.memory_space<vmem>>, %arg7: memref<32x1xf32, #tpu.memory_space<vmem>>, %arg8: memref<1x32x1xf32, #tpu.memory_space<vmem>>, %arg9: memref<1x16x256xf32, #tpu.memory_space<vmem>>) attributes {dimension_semantics = [#tpu.dimension_semantics<parallel>], iteration_bounds = array<i64: 2>, scalar_prefetch = 0 : i64, scratch_operands = 0 : i64, tpu.core_type = #tpu.core_type<tc>, window_params = [{transform_indices = @transform_0, window_bounds = array<i64: 1, 3, 256>}, {transform_indices = @transform_1, window_bounds = array<i64: 1, 32, 256>}, {pipeline_mode = #tpu.pipeline_mode<synchronous>, transform_indices = @transform_2, window_bounds = array<i64: 16, 32>}, {pipeline_mode = #tpu.pipeline_mode<synchronous>, transform_indices = @transform_3, window_bounds = array<i64: 8, 3>}, {pipeline_mode = #tpu.pipeline_mode<synchronous>, transform_indices = @transform_4, window_bounds = array<i64: 8, 1>}, {pipeline_mode = #tpu.pipeline_mode<synchronous>, transform_indices = @transform_5, window_bounds = array<i64: 32, 8>}, {pipeline_mode = #tpu.pipeline_mode<synchronous>, transform_indices = @transform_6, window_bounds = array<i64: 32, 1>}, {transform_indices = @transform_7, window_bounds = array<i64: 1, 32, 1>}, {transform_indices = @transform_8, window_bounds = array<i64: 1, 16, 256>}]} {
    %c0 = arith.constant 0 : index
    %c0_0 = arith.constant 0 : index
    %c0_1 = arith.constant 0 : index
    %0 = vector.load %arg1[%c0, %c0_0, %c0_1] : memref<1x3x256xf32, #tpu.memory_space<vmem>>, vector<1x3x256xf32>
    %1 = vector.shape_cast %0 : vector<1x3x256xf32> to vector<3x256xf32>
    %c0_2 = arith.constant 0 : index
    %c0_3 = arith.constant 0 : index
    %2 = vector.load %arg4[%c0_2, %c0_3] : memref<8x3xf32, #tpu.memory_space<vmem>>, vector<8x3xf32>
    %cst = arith.constant dense<0.000000e+00> : vector<8x256xf32>
    %3 = tpu.matmul %2, %1, %cst {dimension_numbers = #tpu.dot_dimension_numbers<[1], [0], [0], [1], [0, 0, 1, 1], [], []>} : vector<8x3xf32>, vector<3x256xf32>, vector<8x256xf32> -> vector<8x256xf32>
    %c0_4 = arith.constant 0 : index
    %c0_5 = arith.constant 0 : index
    %4 = vector.load %arg5[%c0_4, %c0_5] : memref<8x1xf32, #tpu.memory_space<vmem>>, vector<8x1xf32>
    %5 = vector.broadcast %4 : vector<8x1xf32> to vector<8x256xf32>
    %6 = arith.addf %3, %5 : vector<8x256xf32>
    %cst_6 = arith.constant 0.000000e+00 : f32
    %7 = vector.broadcast %cst_6 : f32 to vector<8x256xf32>
    %8 = arith.maximumf %6, %7 : vector<8x256xf32>
    %c0_7 = arith.constant 0 : index
    %c0_8 = arith.constant 0 : index
    %9 = vector.load %arg6[%c0_7, %c0_8] : memref<32x8xf32, #tpu.memory_space<vmem>>, vector<32x8xf32>
    %10 = arith.truncf %9 : vector<32x8xf32> to vector<32x8xbf16>
    %11 = arith.truncf %8 : vector<8x256xf32> to vector<8x256xbf16>
    %cst_9 = arith.constant dense<0.000000e+00> : vector<32x256xf32>
    %12 = tpu.matmul %10, %11, %cst_9 {dimension_numbers = #tpu.dot_dimension_numbers<[1], [0], [0], [1], [0, 0, 1, 1], [], []>} : vector<32x8xbf16>, vector<8x256xbf16>, vector<32x256xf32> -> vector<32x256xf32>
    %c0_10 = arith.constant 0 : index
    %c0_11 = arith.constant 0 : index
    %13 = vector.load %arg7[%c0_10, %c0_11] : memref<32x1xf32, #tpu.memory_space<vmem>>, vector<32x1xf32>
    %14 = vector.broadcast %13 : vector<32x1xf32> to vector<32x256xf32>
    %15 = arith.addf %12, %14 : vector<32x256xf32>
    %c0_12 = arith.constant 0 : index
    %c0_13 = arith.constant 0 : index
    %c0_14 = arith.constant 0 : index
    %16 = vector.load %arg2[%c0_12, %c0_13, %c0_14] : memref<1x32x256xf32, #tpu.memory_space<vmem>>, vector<1x32x256xf32>
    %17 = vector.shape_cast %16 : vector<1x32x256xf32> to vector<32x256xf32>
    %18 = arith.addf %15, %17 : vector<32x256xf32>
    %cst_15 = arith.constant dense<0.000000e+00> : vector<32xf32>
    %19 = vector.multi_reduction <add>, %18, %cst_15 [1] : vector<32x256xf32> to vector<32xf32>
    %20 = vector.shape_cast %19 : vector<32xf32> to vector<32x1xf32>
    %cst_16 = arith.constant 3.906250e-03 : f32
    %21 = vector.broadcast %cst_16 : f32 to vector<32x1xf32>
    %22 = arith.mulf %20, %21 : vector<32x1xf32>
    %c0_17 = arith.constant 0 : index
    %c0_18 = arith.constant 0 : index
    %c0_19 = arith.constant 0 : index
    %23 = vector.load %arg8[%c0_17, %c0_18, %c0_19] : memref<1x32x1xf32, #tpu.memory_space<vmem>>, vector<1x32x1xf32>
    %24 = vector.shape_cast %23 : vector<1x32x1xf32> to vector<32x1xf32>
    %25 = vector.shape_cast %22 : vector<32x1xf32> to vector<1x32x1xf32>
    tpu.vector_store %arg8[%c0_17, %c0_18, %c0_19], %25 {strides = array<i32>} : memref<1x32x1xf32, #tpu.memory_space<vmem>>, vector<1x32x1xf32>,
    %c0_20 = arith.constant 0 : index
    %c0_21 = arith.constant 0 : index
    %26 = vector.load %arg3[%c0_20, %c0_21] : memref<16x32xf32, #tpu.memory_space<vmem>>, vector<16x32xf32>
    %27 = arith.truncf %26 : vector<16x32xf32> to vector<16x32xbf16>
    %28 = arith.truncf %18 : vector<32x256xf32> to vector<32x256xbf16>
    %cst_22 = arith.constant dense<0.000000e+00> : vector<16x256xf32>
    %29 = tpu.matmul %27, %28, %cst_22 {dimension_numbers = #tpu.dot_dimension_numbers<[1], [0], [0], [1], [0, 0, 1, 1], [], []>} : vector<16x32xbf16>, vector<32x256xbf16>, vector<16x256xf32> -> vector<16x256xf32>
    %cst_23 = arith.constant 0.176776692 : f32
    %30 = vector.broadcast %cst_23 : f32 to vector<16x256xf32>
    %31 = arith.mulf %29, %30 : vector<16x256xf32>
    %32 = arith.negf %31 : vector<16x256xf32>
    %33 = math.exp %32 : vector<16x256xf32>
    %cst_24 = arith.constant 1.000000e+00 : f32
    %34 = vector.broadcast %cst_24 : f32 to vector<16x256xf32>
    %35 = arith.addf %34, %33 : vector<16x256xf32>
    %36 = arith.divf %34, %35 : vector<16x256xf32>
    %c0_25 = arith.constant 0 : index
    %c0_26 = arith.constant 0 : index
    %c0_27 = arith.constant 0 : index
    %37 = vector.load %arg9[%c0_25, %c0_26, %c0_27] : memref<1x16x256xf32, #tpu.memory_space<vmem>>, vector<1x16x256xf32>
    %38 = vector.shape_cast %37 : vector<1x16x256xf32> to vector<16x256xf32>
    %39 = vector.shape_cast %36 : vector<16x256xf32> to vector<1x16x256xf32>
    tpu.vector_store %arg9[%c0_25, %c0_26, %c0_27], %39 {strides = array<i32>} : memref<1x16x256xf32, #tpu.memory_space<vmem>>, vector<1x16x256xf32>,
    return
  }
  func.func @transform_0(%arg0: i32) -> (i32, i32, i32) {
    %c0_i32 = arith.constant 0 : i32
    %c0_i32_0 = arith.constant 0 : i32
    %c0_i32_1 = arith.constant 0 : i32
    return %arg0, %c0_i32, %c0_i32_0 : i32, i32, i32
  }
  func.func @transform_1(%arg0: i32) -> (i32, i32, i32) {
    %c0_i32 = arith.constant 0 : i32
    %c0_i32_0 = arith.constant 0 : i32
    %c0_i32_1 = arith.constant 0 : i32
    return %arg0, %c0_i32, %c0_i32_0 : i32, i32, i32
  }
  func.func @transform_2(%arg0: i32) -> (i32, i32) {
    %c0_i32 = arith.constant 0 : i32
    %c0_i32_0 = arith.constant 0 : i32
    %c0_i32_1 = arith.constant 0 : i32
    return %c0_i32, %c0_i32_0 : i32, i32
  }
  func.func @transform_3(%arg0: i32) -> (i32, i32) {
    %c0_i32 = arith.constant 0 : i32
    %c0_i32_0 = arith.constant 0 : i32
    %c0_i32_1 = arith.constant 0 : i32
    return %c0_i32, %c0_i32_0 : i32, i32
  }
  func.func @transform_4(%arg0: i32) -> (i32, i32) {
    %c0_i32 = arith.constant 0 : i32
    %c0_i32_0 = arith.constant 0 : i32
    %c0_i32_1 = arith.constant 0 : i32
    return %c0_i32, %c0_i32_0 : i32, i32
  }
  func.func @transform_5(%arg0: i32) -> (i32, i32) {
    %c0_i32 = arith.constant 0 : i32
    %c0_i32_0 = arith.constant 0 : i32
    %c0_i32_1 = arith.constant 0 : i32
    return %c0_i32, %c0_i32_0 : i32, i32
  }
  func.func @transform_6(%arg0: i32) -> (i32, i32) {
    %c0_i32 = arith.constant 0 : i32
    %c0_i32_0 = arith.constant 0 : i32
    %c0_i32_1 = arith.constant 0 : i32
    return %c0_i32, %c0_i32_0 : i32, i32
  }
  func.func @transform_7(%arg0: i32) -> (i32, i32, i32) {
    %c0_i32 = arith.constant 0 : i32
    %c0_i32_0 = arith.constant 0 : i32
    %c0_i32_1 = arith.constant 0 : i32
    return %arg0, %c0_i32, %c0_i32_0 : i32, i32, i32
  }
  func.func @transform_8(%arg0: i32) -> (i32, i32, i32) {
    %c0_i32 = arith.constant 0 : i32
    %c0_i32_0 = arith.constant 0 : i32
    %c0_i32_1 = arith.constant 0 : i32
    return %arg0, %c0_i32, %c0_i32_0 : i32, i32, i32
  }
}

module attributes {stable_mosaic.version = 11 : i64} {
  func.func @_decode_kernel(%arg0: i32, %arg1: memref<8x32xf32, #tpu.memory_space<vmem>>, %arg2: memref<8x32xf32, #tpu.memory_space<vmem>>, %arg3: memref<8x32xf32, #tpu.memory_space<vmem>>, %arg4: memref<2x32xf32, #tpu.memory_space<vmem>>, %arg5: memref<1x32x32xf32, #tpu.memory_space<vmem>>, %arg6: memref<1x1x32xf32, #tpu.memory_space<vmem>>, %arg7: memref<1x32x32xf32, #tpu.memory_space<vmem>>, %arg8: memref<1x1x32xf32, #tpu.memory_space<vmem>>, %arg9: memref<1x32x32xf32, #tpu.memory_space<vmem>>, %arg10: memref<1x1x32xf32, #tpu.memory_space<vmem>>, %arg11: memref<1x2x8x32xf32, #tpu.memory_space<vmem>>, %arg12: memref<1x2x8x64xf32, #tpu.memory_space<vmem>>) attributes {dimension_semantics = [#tpu.dimension_semantics<parallel>], iteration_bounds = array<i64: 3>, scalar_prefetch = 0 : i64, scratch_operands = 0 : i64, tpu.core_type = #tpu.core_type<tc>, window_params = [{pipeline_mode = #tpu.pipeline_mode<synchronous>, transform_indices = @transform_0, window_bounds = array<i64: 8, 32>}, {pipeline_mode = #tpu.pipeline_mode<synchronous>, transform_indices = @transform_1, window_bounds = array<i64: 8, 32>}, {pipeline_mode = #tpu.pipeline_mode<synchronous>, transform_indices = @transform_2, window_bounds = array<i64: 8, 32>}, {pipeline_mode = #tpu.pipeline_mode<synchronous>, transform_indices = @transform_3, window_bounds = array<i64: 2, 32>}, {transform_indices = @transform_4, window_bounds = array<i64: 1, 32, 32>}, {transform_indices = @transform_5, window_bounds = array<i64: 1, 1, 32>}, {transform_indices = @transform_6, window_bounds = array<i64: 1, 32, 32>}, {transform_indices = @transform_7, window_bounds = array<i64: 1, 1, 32>}, {transform_indices = @transform_8, window_bounds = array<i64: 1, 32, 32>}, {transform_indices = @transform_9, window_bounds = array<i64: 1, 1, 32>}, {transform_indices = @transform_10, window_bounds = array<i64: 1, 2, 8, 32>}, {transform_indices = @transform_11, window_bounds = array<i64: 1, 2, 8, 64>}]} {
    %c0 = arith.constant 0 : index
    %c0_0 = arith.constant 0 : index
    %0 = vector.load %arg1[%c0, %c0_0] : memref<8x32xf32, #tpu.memory_space<vmem>>, vector<8x32xf32>
    %1 = arith.truncf %0 : vector<8x32xf32> to vector<8x32xbf16>
    %c0_1 = arith.constant 0 : index
    %c0_2 = arith.constant 0 : index
    %c0_3 = arith.constant 0 : index
    %2 = vector.load %arg5[%c0_1, %c0_2, %c0_3] : memref<1x32x32xf32, #tpu.memory_space<vmem>>, vector<1x32x32xf32>
    %3 = vector.shape_cast %2 : vector<1x32x32xf32> to vector<32x32xf32>
    %4 = arith.truncf %3 : vector<32x32xf32> to vector<32x32xbf16>
    %cst = arith.constant dense<0.000000e+00> : vector<8x32xf32>
    %5 = tpu.matmul %1, %4, %cst {dimension_numbers = #tpu.dot_dimension_numbers<[1], [0], [0], [1], [0, 0, 1, 1], [], []>} : vector<8x32xbf16>, vector<32x32xbf16>, vector<8x32xf32> -> vector<8x32xf32>
    %c0_4 = arith.constant 0 : index
    %c0_5 = arith.constant 0 : index
    %c0_6 = arith.constant 0 : index
    %6 = vector.load %arg6[%c0_4, %c0_5, %c0_6] : memref<1x1x32xf32, #tpu.memory_space<vmem>>, vector<1x1x32xf32>
    %7 = vector.shape_cast %6 : vector<1x1x32xf32> to vector<1x32xf32>
    %8 = vector.broadcast %7 : vector<1x32xf32> to vector<8x32xf32>
    %9 = arith.addf %5, %8 : vector<8x32xf32>
    %c0_7 = arith.constant 0 : index
    %c0_8 = arith.constant 0 : index
    %10 = vector.load %arg2[%c0_7, %c0_8] : memref<8x32xf32, #tpu.memory_space<vmem>>, vector<8x32xf32>
    %11 = arith.truncf %10 : vector<8x32xf32> to vector<8x32xbf16>
    %c0_9 = arith.constant 0 : index
    %c0_10 = arith.constant 0 : index
    %c0_11 = arith.constant 0 : index
    %12 = vector.load %arg7[%c0_9, %c0_10, %c0_11] : memref<1x32x32xf32, #tpu.memory_space<vmem>>, vector<1x32x32xf32>
    %13 = vector.shape_cast %12 : vector<1x32x32xf32> to vector<32x32xf32>
    %14 = arith.truncf %13 : vector<32x32xf32> to vector<32x32xbf16>
    %cst_12 = arith.constant dense<0.000000e+00> : vector<8x32xf32>
    %15 = tpu.matmul %11, %14, %cst_12 {dimension_numbers = #tpu.dot_dimension_numbers<[1], [0], [0], [1], [0, 0, 1, 1], [], []>} : vector<8x32xbf16>, vector<32x32xbf16>, vector<8x32xf32> -> vector<8x32xf32>
    %c0_13 = arith.constant 0 : index
    %c0_14 = arith.constant 0 : index
    %c0_15 = arith.constant 0 : index
    %16 = vector.load %arg8[%c0_13, %c0_14, %c0_15] : memref<1x1x32xf32, #tpu.memory_space<vmem>>, vector<1x1x32xf32>
    %17 = vector.shape_cast %16 : vector<1x1x32xf32> to vector<1x32xf32>
    %18 = vector.broadcast %17 : vector<1x32xf32> to vector<8x32xf32>
    %19 = arith.addf %15, %18 : vector<8x32xf32>
    %c0_16 = arith.constant 0 : index
    %c0_17 = arith.constant 0 : index
    %20 = vector.load %arg3[%c0_16, %c0_17] : memref<8x32xf32, #tpu.memory_space<vmem>>, vector<8x32xf32>
    %21 = arith.truncf %20 : vector<8x32xf32> to vector<8x32xbf16>
    %c0_18 = arith.constant 0 : index
    %c0_19 = arith.constant 0 : index
    %c0_20 = arith.constant 0 : index
    %22 = vector.load %arg9[%c0_18, %c0_19, %c0_20] : memref<1x32x32xf32, #tpu.memory_space<vmem>>, vector<1x32x32xf32>
    %23 = vector.shape_cast %22 : vector<1x32x32xf32> to vector<32x32xf32>
    %24 = arith.truncf %23 : vector<32x32xf32> to vector<32x32xbf16>
    %cst_21 = arith.constant dense<0.000000e+00> : vector<8x32xf32>
    %25 = tpu.matmul %21, %24, %cst_21 {dimension_numbers = #tpu.dot_dimension_numbers<[1], [0], [0], [1], [0, 0, 1, 1], [], []>} : vector<8x32xbf16>, vector<32x32xbf16>, vector<8x32xf32> -> vector<8x32xf32>
    %c0_22 = arith.constant 0 : index
    %c0_23 = arith.constant 0 : index
    %c0_24 = arith.constant 0 : index
    %26 = vector.load %arg10[%c0_22, %c0_23, %c0_24] : memref<1x1x32xf32, #tpu.memory_space<vmem>>, vector<1x1x32xf32>
    %27 = vector.shape_cast %26 : vector<1x1x32xf32> to vector<1x32xf32>
    %28 = vector.broadcast %27 : vector<1x32xf32> to vector<8x32xf32>
    %29 = arith.addf %25, %28 : vector<8x32xf32>
    %c0_25 = arith.constant 0 : index
    %c0_26 = arith.constant 0 : index
    %30 = vector.load %arg4[%c0_25, %c0_26] : memref<2x32xf32, #tpu.memory_space<vmem>>, vector<1x32xf32>
    %31 = vector.broadcast %30 : vector<1x32xf32> to vector<8x32xf32>
    %32 = arith.addf %9, %31 : vector<8x32xf32>
    %33 = math.tanh %32 : vector<8x32xf32>
    %c0_27 = arith.constant 0 : index
    %c0_28 = arith.constant 0 : index
    %c0_29 = arith.constant 0 : index
    %c0_30 = arith.constant 0 : index
    %34 = vector.load %arg11[%c0_27, %c0_28, %c0_29, %c0_30] : memref<1x2x8x32xf32, #tpu.memory_space<vmem>>, vector<1x1x8x32xf32>
    %35 = vector.shape_cast %34 : vector<1x1x8x32xf32> to vector<8x32xf32>
    %36 = vector.shape_cast %33 : vector<8x32xf32> to vector<1x1x8x32xf32>
    tpu.vector_store %arg11[%c0_27, %c0_28, %c0_29, %c0_30], %36 {strides = array<i32>} : memref<1x2x8x32xf32, #tpu.memory_space<vmem>>, vector<1x1x8x32xf32>,
    %37 = vector.broadcast %30 : vector<1x32xf32> to vector<8x32xf32>
    %38 = arith.addf %19, %37 : vector<8x32xf32>
    %39 = math.tanh %38 : vector<8x32xf32>
    %40 = vector.broadcast %30 : vector<1x32xf32> to vector<8x32xf32>
    %41 = arith.addf %29, %40 : vector<8x32xf32>
    %42 = math.tanh %41 : vector<8x32xf32>
    %43 = tpu.concatenate %39, %42 in 1 : vector<8x32xf32>, vector<8x32xf32> -> vector<8x64xf32>
    %c0_31 = arith.constant 0 : index
    %c0_32 = arith.constant 0 : index
    %c0_33 = arith.constant 0 : index
    %c0_34 = arith.constant 0 : index
    %44 = vector.load %arg12[%c0_31, %c0_32, %c0_33, %c0_34] : memref<1x2x8x64xf32, #tpu.memory_space<vmem>>, vector<1x1x8x64xf32>
    %45 = vector.shape_cast %44 : vector<1x1x8x64xf32> to vector<8x64xf32>
    %46 = vector.shape_cast %43 : vector<8x64xf32> to vector<1x1x8x64xf32>
    tpu.vector_store %arg12[%c0_31, %c0_32, %c0_33, %c0_34], %46 {strides = array<i32>} : memref<1x2x8x64xf32, #tpu.memory_space<vmem>>, vector<1x1x8x64xf32>,
    %c1 = arith.constant 1 : index
    %c0_35 = arith.constant 0 : index
    %47 = vector.load %arg4[%c1, %c0_35] : memref<2x32xf32, #tpu.memory_space<vmem>>, vector<1x32xf32>
    %48 = vector.broadcast %47 : vector<1x32xf32> to vector<8x32xf32>
    %49 = arith.addf %9, %48 : vector<8x32xf32>
    %50 = math.tanh %49 : vector<8x32xf32>
    %c0_36 = arith.constant 0 : index
    %c1_37 = arith.constant 1 : index
    %c0_38 = arith.constant 0 : index
    %c0_39 = arith.constant 0 : index
    %51 = vector.load %arg11[%c0_36, %c1_37, %c0_38, %c0_39] : memref<1x2x8x32xf32, #tpu.memory_space<vmem>>, vector<1x1x8x32xf32>
    %52 = vector.shape_cast %51 : vector<1x1x8x32xf32> to vector<8x32xf32>
    %53 = vector.shape_cast %50 : vector<8x32xf32> to vector<1x1x8x32xf32>
    tpu.vector_store %arg11[%c0_36, %c1_37, %c0_38, %c0_39], %53 {strides = array<i32>} : memref<1x2x8x32xf32, #tpu.memory_space<vmem>>, vector<1x1x8x32xf32>,
    %54 = vector.broadcast %47 : vector<1x32xf32> to vector<8x32xf32>
    %55 = arith.addf %19, %54 : vector<8x32xf32>
    %56 = math.tanh %55 : vector<8x32xf32>
    %57 = vector.broadcast %47 : vector<1x32xf32> to vector<8x32xf32>
    %58 = arith.addf %29, %57 : vector<8x32xf32>
    %59 = math.tanh %58 : vector<8x32xf32>
    %60 = tpu.concatenate %56, %59 in 1 : vector<8x32xf32>, vector<8x32xf32> -> vector<8x64xf32>
    %c0_40 = arith.constant 0 : index
    %c1_41 = arith.constant 1 : index
    %c0_42 = arith.constant 0 : index
    %c0_43 = arith.constant 0 : index
    %61 = vector.load %arg12[%c0_40, %c1_41, %c0_42, %c0_43] : memref<1x2x8x64xf32, #tpu.memory_space<vmem>>, vector<1x1x8x64xf32>
    %62 = vector.shape_cast %61 : vector<1x1x8x64xf32> to vector<8x64xf32>
    %63 = vector.shape_cast %60 : vector<8x64xf32> to vector<1x1x8x64xf32>
    tpu.vector_store %arg12[%c0_40, %c1_41, %c0_42, %c0_43], %63 {strides = array<i32>} : memref<1x2x8x64xf32, #tpu.memory_space<vmem>>, vector<1x1x8x64xf32>,
    return
  }
  func.func @transform_0(%arg0: i32) -> (i32, i32) {
    %c0_i32 = arith.constant 0 : i32
    %c0_i32_0 = arith.constant 0 : i32
    %c0_i32_1 = arith.constant 0 : i32
    return %c0_i32, %c0_i32_0 : i32, i32
  }
  func.func @transform_1(%arg0: i32) -> (i32, i32) {
    %c0_i32 = arith.constant 0 : i32
    %c0_i32_0 = arith.constant 0 : i32
    %c0_i32_1 = arith.constant 0 : i32
    return %c0_i32, %c0_i32_0 : i32, i32
  }
  func.func @transform_2(%arg0: i32) -> (i32, i32) {
    %c0_i32 = arith.constant 0 : i32
    %c0_i32_0 = arith.constant 0 : i32
    %c0_i32_1 = arith.constant 0 : i32
    return %c0_i32, %c0_i32_0 : i32, i32
  }
  func.func @transform_3(%arg0: i32) -> (i32, i32) {
    %c0_i32 = arith.constant 0 : i32
    %c0_i32_0 = arith.constant 0 : i32
    %c0_i32_1 = arith.constant 0 : i32
    return %c0_i32, %c0_i32_0 : i32, i32
  }
  func.func @transform_4(%arg0: i32) -> (i32, i32, i32) {
    %c0_i32 = arith.constant 0 : i32
    %c0_i32_0 = arith.constant 0 : i32
    %c0_i32_1 = arith.constant 0 : i32
    return %arg0, %c0_i32, %c0_i32_0 : i32, i32, i32
  }
  func.func @transform_5(%arg0: i32) -> (i32, i32, i32) {
    %c0_i32 = arith.constant 0 : i32
    %c0_i32_0 = arith.constant 0 : i32
    %c0_i32_1 = arith.constant 0 : i32
    return %arg0, %c0_i32, %c0_i32_0 : i32, i32, i32
  }
  func.func @transform_6(%arg0: i32) -> (i32, i32, i32) {
    %c0_i32 = arith.constant 0 : i32
    %c0_i32_0 = arith.constant 0 : i32
    %c0_i32_1 = arith.constant 0 : i32
    return %arg0, %c0_i32, %c0_i32_0 : i32, i32, i32
  }
  func.func @transform_7(%arg0: i32) -> (i32, i32, i32) {
    %c0_i32 = arith.constant 0 : i32
    %c0_i32_0 = arith.constant 0 : i32
    %c0_i32_1 = arith.constant 0 : i32
    return %arg0, %c0_i32, %c0_i32_0 : i32, i32, i32
  }
  func.func @transform_8(%arg0: i32) -> (i32, i32, i32) {
    %c0_i32 = arith.constant 0 : i32
    %c0_i32_0 = arith.constant 0 : i32
    %c0_i32_1 = arith.constant 0 : i32
    return %arg0, %c0_i32, %c0_i32_0 : i32, i32, i32
  }
  func.func @transform_9(%arg0: i32) -> (i32, i32, i32) {
    %c0_i32 = arith.constant 0 : i32
    %c0_i32_0 = arith.constant 0 : i32
    %c0_i32_1 = arith.constant 0 : i32
    return %arg0, %c0_i32, %c0_i32_0 : i32, i32, i32
  }
  func.func @transform_10(%arg0: i32) -> (i32, i32, i32, i32) {
    %c0_i32 = arith.constant 0 : i32
    %c0_i32_0 = arith.constant 0 : i32
    %c0_i32_1 = arith.constant 0 : i32
    %c0_i32_2 = arith.constant 0 : i32
    return %arg0, %c0_i32, %c0_i32_0, %c0_i32_1 : i32, i32, i32, i32
  }
  func.func @transform_11(%arg0: i32) -> (i32, i32, i32, i32) {
    %c0_i32 = arith.constant 0 : i32
    %c0_i32_0 = arith.constant 0 : i32
    %c0_i32_1 = arith.constant 0 : i32
    %c0_i32_2 = arith.constant 0 : i32
    return %arg0, %c0_i32, %c0_i32_0, %c0_i32_1 : i32, i32, i32, i32
  }
}

module attributes {stable_mosaic.version = 11 : i64} {
  func.func @_heads_kernel(%arg0: i32, %arg1: memref<1x16x32xf32, #tpu.memory_space<vmem>>, %arg2: memref<1x32x64xf32, #tpu.memory_space<vmem>>, %arg3: memref<1x1x64xf32, #tpu.memory_space<vmem>>, %arg4: memref<1x32x32xf32, #tpu.memory_space<vmem>>, %arg5: memref<1x1x32xf32, #tpu.memory_space<vmem>>, %arg6: memref<1x32x32xf32, #tpu.memory_space<vmem>>, %arg7: memref<1x1x32xf32, #tpu.memory_space<vmem>>, %arg8: memref<1x32x64xf32, #tpu.memory_space<vmem>>, %arg9: memref<1x1x64xf32, #tpu.memory_space<vmem>>, %arg10: memref<1x16x128xf32, #tpu.memory_space<vmem>>) attributes {dimension_semantics = [#tpu.dimension_semantics<parallel>], iteration_bounds = array<i64: 3>, scalar_prefetch = 0 : i64, scratch_operands = 0 : i64, tpu.core_type = #tpu.core_type<tc>, window_params = [{transform_indices = @transform_0, window_bounds = array<i64: 1, 16, 32>}, {transform_indices = @transform_1, window_bounds = array<i64: 1, 32, 64>}, {transform_indices = @transform_2, window_bounds = array<i64: 1, 1, 64>}, {transform_indices = @transform_3, window_bounds = array<i64: 1, 32, 32>}, {transform_indices = @transform_4, window_bounds = array<i64: 1, 1, 32>}, {transform_indices = @transform_5, window_bounds = array<i64: 1, 32, 32>}, {transform_indices = @transform_6, window_bounds = array<i64: 1, 1, 32>}, {transform_indices = @transform_7, window_bounds = array<i64: 1, 32, 64>}, {transform_indices = @transform_8, window_bounds = array<i64: 1, 1, 64>}, {transform_indices = @transform_9, window_bounds = array<i64: 1, 16, 128>}]} {
    %c0 = arith.constant 0 : index
    %c0_0 = arith.constant 0 : index
    %c0_1 = arith.constant 0 : index
    %0 = vector.load %arg1[%c0, %c0_0, %c0_1] : memref<1x16x32xf32, #tpu.memory_space<vmem>>, vector<1x16x32xf32>
    %1 = vector.shape_cast %0 : vector<1x16x32xf32> to vector<16x32xf32>
    %2 = arith.truncf %1 : vector<16x32xf32> to vector<16x32xbf16>
    %c0_2 = arith.constant 0 : index
    %c0_3 = arith.constant 0 : index
    %c0_4 = arith.constant 0 : index
    %3 = vector.load %arg2[%c0_2, %c0_3, %c0_4] : memref<1x32x64xf32, #tpu.memory_space<vmem>>, vector<1x32x64xf32>
    %4 = vector.shape_cast %3 : vector<1x32x64xf32> to vector<32x64xf32>
    %5 = arith.truncf %4 : vector<32x64xf32> to vector<32x64xbf16>
    %cst = arith.constant dense<0.000000e+00> : vector<16x64xf32>
    %6 = tpu.matmul %2, %5, %cst {dimension_numbers = #tpu.dot_dimension_numbers<[1], [0], [0], [1], [0, 0, 1, 1], [], []>} : vector<16x32xbf16>, vector<32x64xbf16>, vector<16x64xf32> -> vector<16x64xf32>
    %c0_5 = arith.constant 0 : index
    %c0_6 = arith.constant 0 : index
    %c0_7 = arith.constant 0 : index
    %7 = vector.load %arg3[%c0_5, %c0_6, %c0_7] : memref<1x1x64xf32, #tpu.memory_space<vmem>>, vector<1x1x64xf32>
    %8 = vector.shape_cast %7 : vector<1x1x64xf32> to vector<1x64xf32>
    %9 = vector.broadcast %8 : vector<1x64xf32> to vector<16x64xf32>
    %10 = arith.addf %6, %9 : vector<16x64xf32>
    %c0_8 = arith.constant 0 : index
    %c0_9 = arith.constant 0 : index
    %c0_10 = arith.constant 0 : index
    %11 = vector.load %arg4[%c0_8, %c0_9, %c0_10] : memref<1x32x32xf32, #tpu.memory_space<vmem>>, vector<1x32x32xf32>
    %12 = vector.shape_cast %11 : vector<1x32x32xf32> to vector<32x32xf32>
    %13 = arith.truncf %12 : vector<32x32xf32> to vector<32x32xbf16>
    %cst_11 = arith.constant dense<0.000000e+00> : vector<16x32xf32>
    %14 = tpu.matmul %2, %13, %cst_11 {dimension_numbers = #tpu.dot_dimension_numbers<[1], [0], [0], [1], [0, 0, 1, 1], [], []>} : vector<16x32xbf16>, vector<32x32xbf16>, vector<16x32xf32> -> vector<16x32xf32>
    %c0_12 = arith.constant 0 : index
    %c0_13 = arith.constant 0 : index
    %c0_14 = arith.constant 0 : index
    %15 = vector.load %arg5[%c0_12, %c0_13, %c0_14] : memref<1x1x32xf32, #tpu.memory_space<vmem>>, vector<1x1x32xf32>
    %16 = vector.shape_cast %15 : vector<1x1x32xf32> to vector<1x32xf32>
    %17 = vector.broadcast %16 : vector<1x32xf32> to vector<16x32xf32>
    %18 = arith.addf %14, %17 : vector<16x32xf32>
    %cst_15 = arith.constant 0.000000e+00 : f32
    %19 = vector.broadcast %cst_15 : f32 to vector<16x32xf32>
    %20 = arith.maximumf %18, %19 : vector<16x32xf32>
    %21 = arith.truncf %20 : vector<16x32xf32> to vector<16x32xbf16>
    %c0_16 = arith.constant 0 : index
    %c0_17 = arith.constant 0 : index
    %c0_18 = arith.constant 0 : index
    %22 = vector.load %arg6[%c0_16, %c0_17, %c0_18] : memref<1x32x32xf32, #tpu.memory_space<vmem>>, vector<1x32x32xf32>
    %23 = vector.shape_cast %22 : vector<1x32x32xf32> to vector<32x32xf32>
    %24 = arith.truncf %23 : vector<32x32xf32> to vector<32x32xbf16>
    %cst_19 = arith.constant dense<0.000000e+00> : vector<16x32xf32>
    %25 = tpu.matmul %21, %24, %cst_19 {dimension_numbers = #tpu.dot_dimension_numbers<[1], [0], [0], [1], [0, 0, 1, 1], [], []>} : vector<16x32xbf16>, vector<32x32xbf16>, vector<16x32xf32> -> vector<16x32xf32>
    %c0_20 = arith.constant 0 : index
    %c0_21 = arith.constant 0 : index
    %c0_22 = arith.constant 0 : index
    %26 = vector.load %arg7[%c0_20, %c0_21, %c0_22] : memref<1x1x32xf32, #tpu.memory_space<vmem>>, vector<1x1x32xf32>
    %27 = vector.shape_cast %26 : vector<1x1x32xf32> to vector<1x32xf32>
    %28 = vector.broadcast %27 : vector<1x32xf32> to vector<16x32xf32>
    %29 = arith.addf %25, %28 : vector<16x32xf32>
    %cst_23 = arith.constant 0.000000e+00 : f32
    %30 = vector.broadcast %cst_23 : f32 to vector<16x32xf32>
    %31 = arith.maximumf %29, %30 : vector<16x32xf32>
    %32 = arith.truncf %31 : vector<16x32xf32> to vector<16x32xbf16>
    %c0_24 = arith.constant 0 : index
    %c0_25 = arith.constant 0 : index
    %c0_26 = arith.constant 0 : index
    %33 = vector.load %arg8[%c0_24, %c0_25, %c0_26] : memref<1x32x64xf32, #tpu.memory_space<vmem>>, vector<1x32x64xf32>
    %34 = vector.shape_cast %33 : vector<1x32x64xf32> to vector<32x64xf32>
    %35 = arith.truncf %34 : vector<32x64xf32> to vector<32x64xbf16>
    %cst_27 = arith.constant dense<0.000000e+00> : vector<16x64xf32>
    %36 = tpu.matmul %32, %35, %cst_27 {dimension_numbers = #tpu.dot_dimension_numbers<[1], [0], [0], [1], [0, 0, 1, 1], [], []>} : vector<16x32xbf16>, vector<32x64xbf16>, vector<16x64xf32> -> vector<16x64xf32>
    %c0_28 = arith.constant 0 : index
    %c0_29 = arith.constant 0 : index
    %c0_30 = arith.constant 0 : index
    %37 = vector.load %arg9[%c0_28, %c0_29, %c0_30] : memref<1x1x64xf32, #tpu.memory_space<vmem>>, vector<1x1x64xf32>
    %38 = vector.shape_cast %37 : vector<1x1x64xf32> to vector<1x64xf32>
    %39 = vector.broadcast %38 : vector<1x64xf32> to vector<16x64xf32>
    %40 = arith.addf %36, %39 : vector<16x64xf32>
    %41 = arith.negf %40 : vector<16x64xf32>
    %42 = math.exp %41 : vector<16x64xf32>
    %cst_31 = arith.constant 1.000000e+00 : f32
    %43 = vector.broadcast %cst_31 : f32 to vector<16x64xf32>
    %44 = arith.addf %43, %42 : vector<16x64xf32>
    %45 = arith.divf %43, %44 : vector<16x64xf32>
    %46 = tpu.concatenate %10, %45 in 1 : vector<16x64xf32>, vector<16x64xf32> -> vector<16x128xf32>
    %c0_32 = arith.constant 0 : index
    %c0_33 = arith.constant 0 : index
    %c0_34 = arith.constant 0 : index
    %47 = vector.load %arg10[%c0_32, %c0_33, %c0_34] : memref<1x16x128xf32, #tpu.memory_space<vmem>>, vector<1x16x128xf32>
    %48 = vector.shape_cast %47 : vector<1x16x128xf32> to vector<16x128xf32>
    %49 = vector.shape_cast %46 : vector<16x128xf32> to vector<1x16x128xf32>
    tpu.vector_store %arg10[%c0_32, %c0_33, %c0_34], %49 {strides = array<i32>} : memref<1x16x128xf32, #tpu.memory_space<vmem>>, vector<1x16x128xf32>,
    return
  }
  func.func @transform_0(%arg0: i32) -> (i32, i32, i32) {
    %c0_i32 = arith.constant 0 : i32
    %c0_i32_0 = arith.constant 0 : i32
    %c0_i32_1 = arith.constant 0 : i32
    return %arg0, %c0_i32, %c0_i32_0 : i32, i32, i32
  }
  func.func @transform_1(%arg0: i32) -> (i32, i32, i32) {
    %c0_i32 = arith.constant 0 : i32
    %c0_i32_0 = arith.constant 0 : i32
    %c0_i32_1 = arith.constant 0 : i32
    return %arg0, %c0_i32, %c0_i32_0 : i32, i32, i32
  }
  func.func @transform_2(%arg0: i32) -> (i32, i32, i32) {
    %c0_i32 = arith.constant 0 : i32
    %c0_i32_0 = arith.constant 0 : i32
    %c0_i32_1 = arith.constant 0 : i32
    return %arg0, %c0_i32, %c0_i32_0 : i32, i32, i32
  }
  func.func @transform_3(%arg0: i32) -> (i32, i32, i32) {
    %c0_i32 = arith.constant 0 : i32
    %c0_i32_0 = arith.constant 0 : i32
    %c0_i32_1 = arith.constant 0 : i32
    return %arg0, %c0_i32, %c0_i32_0 : i32, i32, i32
  }
  func.func @transform_4(%arg0: i32) -> (i32, i32, i32) {
    %c0_i32 = arith.constant 0 : i32
    %c0_i32_0 = arith.constant 0 : i32
    %c0_i32_1 = arith.constant 0 : i32
    return %arg0, %c0_i32, %c0_i32_0 : i32, i32, i32
  }
  func.func @transform_5(%arg0: i32) -> (i32, i32, i32) {
    %c0_i32 = arith.constant 0 : i32
    %c0_i32_0 = arith.constant 0 : i32
    %c0_i32_1 = arith.constant 0 : i32
    return %arg0, %c0_i32, %c0_i32_0 : i32, i32, i32
  }
  func.func @transform_6(%arg0: i32) -> (i32, i32, i32) {
    %c0_i32 = arith.constant 0 : i32
    %c0_i32_0 = arith.constant 0 : i32
    %c0_i32_1 = arith.constant 0 : i32
    return %arg0, %c0_i32, %c0_i32_0 : i32, i32, i32
  }
  func.func @transform_7(%arg0: i32) -> (i32, i32, i32) {
    %c0_i32 = arith.constant 0 : i32
    %c0_i32_0 = arith.constant 0 : i32
    %c0_i32_1 = arith.constant 0 : i32
    return %arg0, %c0_i32, %c0_i32_0 : i32, i32, i32
  }
  func.func @transform_8(%arg0: i32) -> (i32, i32, i32) {
    %c0_i32 = arith.constant 0 : i32
    %c0_i32_0 = arith.constant 0 : i32
    %c0_i32_1 = arith.constant 0 : i32
    return %arg0, %c0_i32, %c0_i32_0 : i32, i32, i32
  }
  func.func @transform_9(%arg0: i32) -> (i32, i32, i32) {
    %c0_i32 = arith.constant 0 : i32
    %c0_i32_0 = arith.constant 0 : i32
    %c0_i32_1 = arith.constant 0 : i32
    return %arg0, %c0_i32, %c0_i32_0 : i32, i32, i32
  }
}

</mosaic_0001>

<llo_original>
// kernel: reltr_forward.4
$region0: #{reltr_forward.4}
  #allocation0 [shape = 'u32[]', space=smem, size = 0x4, offset = 0x4, fixed_abs, tag = 'smem constant byte address 0x4 - core index']
  #allocation1 [shape = 'u32[144,128]{1,0:T(1,128)}', space=vmem, size = 0x12000, scoped, tag = 'internal scratch']
  %s0 = inlined_call_operand.vmem [shape: f32[8,32], index: 0, kind: input, shape index: {}]
  %s1 = inlined_call_operand.vmem [shape: f32[8,32], index: 1, kind: input, shape index: {}]
  %s2 = inlined_call_operand.vmem [shape: f32[8,32], index: 2, kind: input, shape index: {}]
  %s3 = inlined_call_operand.vmem [shape: f32[2,32], index: 3, kind: input, shape index: {}]
  %s4 = inlined_call_operand.vmem [shape: f32[3,32,32], index: 4, kind: input, shape index: {}]
  %s5 = inlined_call_operand.vmem [shape: f32[3,1,32], index: 5, kind: input, shape index: {}]
  %s6 = inlined_call_operand.vmem [shape: f32[3,32,32], index: 6, kind: input, shape index: {}]
  %s7 = inlined_call_operand.vmem [shape: f32[3,1,32], index: 7, kind: input, shape index: {}]
  %s8 = inlined_call_operand.vmem [shape: f32[3,32,32], index: 8, kind: input, shape index: {}]
  %s9 = inlined_call_operand.vmem [shape: f32[3,1,32], index: 9, kind: input, shape index: {}]
  %s10 = inlined_call_operand.vmem [shape: f32[3,2,8,32], index: 10, kind: output, shape index: {0}]
  %s11 = inlined_call_operand.vmem [shape: f32[3,2,8,64], index: 11, kind: output, shape index: {1}]
  %12 = xla_tuple %s10, %s11
  %s13 = sld [smem:[#allocation0]]
  $region81: #{reltr_forward.4} parent=0
    _
  %s15 = ssub.s32 1, %s13
  %s16 = scalar_select 0, %s15, %s13
  loop: start=0, step=1, limit=5
  $region2: #{reltr_forward.4} parent=0 // loop_pre_header
    _
  $region3: #{reltr_forward.4} parent=0 // loop_header
    %s18 = sphi 0, %s22
    %p19 = scmp.ge.s32.totalorder %s18, 5
    %s26 = sphi 0, %s26
    %s28 = sphi 0, %s26
    %s29 = sphi 0, %s28
    %s43 = sphi 0, %s29
    %s47 = sphi 0, %s47
    %s49 = sphi 0, %s47
    %s50 = sphi 0, %s49
    %s64 = sphi 0, %s50
    %s68 = sphi 0, %s68
    %s70 = sphi 0, %s68
    %s71 = sphi 0, %s70
    %s85 = sphi 0, %s71
    %s89 = sphi 0, %s89
    %s91 = sphi 0, %s89
    %s92 = sphi 0, %s91
    %s106 = sphi 0, %s92
    %s112 = sphi 0, %s114
    %s115 = sphi 0, %s112
    %s116 = sphi 0, %s115
    %s132 = sphi 0, %s116
    %s138 = sphi 0, %s140
    %s141 = sphi 0, %s138
    %s142 = sphi 0, %s141
    %s158 = sphi 0, %s142
    %s164 = sphi 0, %s166
    %s167 = sphi 0, %s164
    %s168 = sphi 0, %s167
    %s184 = sphi 0, %s168
    %s190 = sphi 0, %s192
    %s193 = sphi 0, %s190
    %s194 = sphi 0, %s193
    %s210 = sphi 0, %s194
    %s216 = sphi 0, %s218
    %s219 = sphi 0, %s216
    %s220 = sphi 0, %s219
    %s236 = sphi 0, %s220
    %s242 = sphi 0, %s244
    %s245 = sphi 0, %s242
    %s246 = sphi 0, %s245
    %s262 = sphi 0, %s246
    %s268 = sphi 0, %s270
    %s271 = sphi 0, %s268
    %s272 = sphi 0, %s271
    %s288 = sphi 0, %s272
    %s294 = sphi 0, %s296
    %s297 = sphi 0, %s294
    %s298 = sphi 0, %s297
    %s314 = sphi 0, %s298
  $region4: #{reltr_forward.4} parent=0 // loop_header_branch
    %21 = sbr.rel (%p19) target = $region8
  $region5: #{reltr_forward.4} parent=0 // loop_body
    %s23 = ssub.s32 %s18, 1
    %s24 = ssub.s32 %s18, 2
    %s25 = sadd.s32 %s18, 1
    %s27 = sadd.s32 %s26, 1
    %p30 = scmp.eq.s32.totalorder %s18, 2
    %p31 = scmp.ne.s32.totalorder %s26, %s28
    %p32 = scmp.eq.s32.totalorder %s18, 0
    %p33 = por %p31, %p32
    %p34 = scmp.ne.s32.totalorder %s26, %s28
    %p35 = scmp.eq.s32.totalorder %s23, 2
    %p36 = por %p34, %p35
    %p37 = scmp.ne.s32.totalorder %s28, %s29
    %p38 = scmp.eq.s32.totalorder %s23, 0
    %p39 = por %p37, %p38
    %p40 = scmp.ne.s32.totalorder %s28, %s29
    %p41 = scmp.eq.s32.totalorder %s24, 2
    %p42 = por %p40, %p41
    %p44 = scmp.ne.s32.totalorder %s29, %s43
    %p45 = scmp.eq.s32.totalorder %s24, 0
    %p46 = por %p44, %p45
    %s48 = sadd.s32 %s47, 1
    %p51 = scmp.eq.s32.totalorder %s18, 2
    %p52 = scmp.ne.s32.totalorder %s47, %s49
    %p53 = scmp.eq.s32.totalorder %s18, 0
    %p54 = por %p52, %p53
    %p55 = scmp.ne.s32.totalorder %s47, %s49
    %p56 = scmp.eq.s32.totalorder %s23, 2
    %p57 = por %p55, %p56
    %p58 = scmp.ne.s32.totalorder %s49, %s50
    %p59 = scmp.eq.s32.totalorder %s23, 0
    %p60 = por %p58, %p59
    %p61 = scmp.ne.s32.totalorder %s49, %s50
    %p62 = scmp.eq.s32.totalorder %s24, 2
    %p63 = por %p61, %p62
    %p65 = scmp.ne.s32.totalorder %s50, %s64
    %p66 = scmp.eq.s32.totalorder %s24, 0
    %p67 = por %p65, %p66
    %s69 = sadd.s32 %s68, 1
    %p72 = scmp.eq.s32.totalorder %s18, 2
    %p73 = scmp.ne.s32.totalorder %s68, %s70
    %p74 = scmp.eq.s32.totalorder %s18, 0
    %p75 = por %p73, %p74
    %p76 = scmp.ne.s32.totalorder %s68, %s70
    %p77 = scmp.eq.s32.totalorder %s23, 2
    %p78 = por %p76, %p77
    %p79 = scmp.ne.s32.totalorder %s70, %s71
    %p80 = scmp.eq.s32.totalorder %s23, 0
    %p81 = por %p79, %p80
    %p82 = scmp.ne.s32.totalorder %s70, %s71
    %p83 = scmp.eq.s32.totalorder %s24, 2
    %p84 = por %p82, %p83
    %p86 = scmp.ne.s32.totalorder %s71, %s85
    %p87 = scmp.eq.s32.totalorder %s24, 0
    %p88 = por %p86, %p87
    %s90 = sadd.s32 %s89, 1
    %p93 = scmp.eq.s32.totalorder %s18, 2
    %p94 = scmp.ne.s32.totalorder %s89, %s91
    %p95 = scmp.eq.s32.totalorder %s18, 0
    %p96 = por %p94, %p95
    %p97 = scmp.ne.s32.totalorder %s89, %s91
    %p98 = scmp.eq.s32.totalorder %s23, 2
    %p99 = por %p97, %p98
    %p100 = scmp.ne.s32.totalorder %s91, %s92
    %p101 = scmp.eq.s32.totalorder %s23, 0
    %p102 = por %p100, %p101
    %p103 = scmp.ne.s32.totalorder %s91, %s92
    %p104 = scmp.eq.s32.totalorder %s24, 2
    %p105 = por %p103, %p104
    %p107 = scmp.ne.s32.totalorder %s92, %s106
    %p108 = scmp.eq.s32.totalorder %s24, 0
    %p109 = por %p107, %p108
    %s110 = ssub.s32 %s18, %s25
    %p111 = scmp.eq.s32.totalorder %s110, 0
    %s113 = sadd.s32 %s112, 1
    %s114 = scalar_select %p111, %s112, %s113
    %p117 = pneg %p111
    %p118 = scmp.eq.s32.totalorder %s18, 2
    %p119 = por %p117, %p118
    %p120 = scmp.ne.s32.totalorder %s112, %s115
    %p121 = scmp.eq.s32.totalorder %s18, 0
    %p122 = por %p120, %p121
    %p123 = scmp.ne.s32.totalorder %s112, %s115
    %p124 = scmp.eq.s32.totalorder %s23, 2
    %p125 = por %p123, %p124
    %p126 = scmp.ne.s32.totalorder %s115, %s116
    %p127 = scmp.eq.s32.totalorder %s23, 0
    %p128 = por %p126, %p127
    %p129 = scmp.ne.s32.totalorder %s115, %s116
    %p130 = scmp.eq.s32.totalorder %s24, 2
    %p131 = por %p129, %p130
    %p133 = scmp.ne.s32.totalorder %s116, %s132
    %p134 = scmp.eq.s32.totalorder %s24, 0
    %p135 = por %p133, %p134
    %s136 = ssub.s32 %s18, %s25
    %p137 = scmp.eq.s32.totalorder %s136, 0
    %s139 = sadd.s32 %s138, 1
    %s140 = scalar_select %p137, %s138, %s139
    %p143 = pneg %p137
    %p144 = scmp.eq.s32.totalorder %s18, 2
    %p145 = por %p143, %p144
    %p146 = scmp.ne.s32.totalorder %s138, %s141
    %p147 = scmp.eq.s32.totalorder %s18, 0
    %p148 = por %p146, %p147
    %p149 = scmp.ne.s32.totalorder %s138, %s141
    %p150 = scmp.eq.s32.totalorder %s23, 2
    %p151 = por %p149, %p150
    %p152 = scmp.ne.s32.totalorder %s141, %s142
    %p153 = scmp.eq.s32.totalorder %s23, 0
    %p154 = por %p152, %p153
    %p155 = scmp.ne.s32.totalorder %s141, %s142
    %p156 = scmp.eq.s32.totalorder %s24, 2
    %p157 = por %p155, %p156
    %p159 = scmp.ne.s32.totalorder %s142, %s158
    %p160 = scmp.eq.s32.totalorder %s24, 0
    %p161 = por %p159, %p160
    %s162 = ssub.s32 %s18, %s25
    %p163 = scmp.eq.s32.totalorder %s162, 0
    %s165 = sadd.s32 %s164, 1
    %s166 = scalar_select %p163, %s164, %s165
    %p169 = pneg %p163
    %p170 = scmp.eq.s32.totalorder %s18, 2
    %p171 = por %p169, %p170
    %p172 = scmp.ne.s32.totalorder %s164, %s167
    %p173 = scmp.eq.s32.totalorder %s18, 0
    %p174 = por %p172, %p173
    %p175 = scmp.ne.s32.totalorder %s164, %s167
    %p176 = scmp.eq.s32.totalorder %s23, 2
    %p177 = por %p175, %p176
    %p178 = scmp.ne.s32.totalorder %s167, %s168
    %p179 = scmp.eq.s32.totalorder %s23, 0
    %p180 = por %p178, %p179
    %p181 = scmp.ne.s32.totalorder %s167, %s168
    %p182 = scmp.eq.s32.totalorder %s24, 2
    %p183 = por %p181, %p182
    %p185 = scmp.ne.s32.totalorder %s168, %s184
    %p186 = scmp.eq.s32.totalorder %s24, 0
    %p187 = por %p185, %p186
    %s188 = ssub.s32 %s18, %s25
    %p189 = scmp.eq.s32.totalorder %s188, 0
    %s191 = sadd.s32 %s190, 1
    %s192 = scalar_select %p189, %s190, %s191
    %p195 = pneg %p189
    %p196 = scmp.eq.s32.totalorder %s18, 2
    %p197 = por %p195, %p196
    %p198 = scmp.ne.s32.totalorder %s190, %s193
    %p199 = scmp.eq.s32.totalorder %s18, 0
    %p200 = por %p198, %p199
    %p201 = scmp.ne.s32.totalorder %s190, %s193
    %p202 = scmp.eq.s32.totalorder %s23, 2
    %p203 = por %p201, %p202
    %p204 = scmp.ne.s32.totalorder %s193, %s194
    %p205 = scmp.eq.s32.totalorder %s23, 0
    %p206 = por %p204, %p205
    %p207 = scmp.ne.s32.totalorder %s193, %s194
    %p208 = scmp.eq.s32.totalorder %s24, 2
    %p209 = por %p207, %p208
    %p211 = scmp.ne.s32.totalorder %s194, %s210
    %p212 = scmp.eq.s32.totalorder %s24, 0
    %p213 = por %p211, %p212
    %s214 = ssub.s32 %s18, %s25
    %p215 = scmp.eq.s32.totalorder %s214, 0
    %s217 = sadd.s32 %s216, 1
    %s218 = scalar_select %p215, %s216, %s217
    %p221 = pneg %p215
    %p222 = scmp.eq.s32.totalorder %s18, 2
    %p223 = por %p221, %p222
    %p224 = scmp.ne.s32.totalorder %s216, %s219
    %p225 = scmp.eq.s32.totalorder %s18, 0
    %p226 = por %p224, %p225
    %p227 = scmp.ne.s32.totalorder %s216, %s219
    %p228 = scmp.eq.s32.totalorder %s23, 2
    %p229 = por %p227, %p228
    %p230 = scmp.ne.s32.totalorder %s219, %s220
    %p231 = scmp.eq.s32.totalorder %s23, 0
    %p232 = por %p230, %p231
    %p233 = scmp.ne.s32.totalorder %s219, %s220
    %p234 = scmp.eq.s32.totalorder %s24, 2
    %p235 = por %p233, %p234
    %p237 = scmp.ne.s32.totalorder %s220, %s236
    %p238 = scmp.eq.s32.totalorder %s24, 0
    %p239 = por %p237, %p238
    %s240 = ssub.s32 %s18, %s25
    %p241 = scmp.eq.s32.totalorder %s240, 0
    %s243 = sadd.s32 %s242, 1
    %s244 = scalar_select %p241, %s242, %s243
    %p247 = pneg %p241
    %p248 = scmp.eq.s32.totalorder %s18, 2
    %p249 = por %p247, %p248
    %p250 = scmp.ne.s32.totalorder %s242, %s245
    %p251 = scmp.eq.s32.totalorder %s18, 0
    %p252 = por %p250, %p251
    %p253 = scmp.ne.s32.totalorder %s242, %s245
    %p254 = scmp.eq.s32.totalorder %s23, 2
    %p255 = por %p253, %p254
    %p256 = scmp.ne.s32.totalorder %s245, %s246
    %p257 = scmp.eq.s32.totalorder %s23, 0
    %p258 = por %p256, %p257
    %p259 = scmp.ne.s32.totalorder %s245, %s246
    %p260 = scmp.eq.s32.totalorder %s24, 2
    %p261 = por %p259, %p260
    %p263 = scmp.ne.s32.totalorder %s246, %s262
    %p264 = scmp.eq.s32.totalorder %s24, 0
    %p265 = por %p263, %p264
    %s266 = ssub.s32 %s18, %s25
    %p267 = scmp.eq.s32.totalorder %s266, 0
    %s269 = sadd.s32 %s268, 1
    %s270 = scalar_select %p267, %s268, %s269
    %p273 = pneg %p267
    %p274 = scmp.eq.s32.totalorder %s18, 2
    %p275 = por %p273, %p274
    %p276 = scmp.ne.s32.totalorder %s268, %s271
    %p277 = scmp.eq.s32.totalorder %s18, 0
    %p278 = por %p276, %p277
    %p279 = scmp.ne.s32.totalorder %s268, %s271
    %p280 = scmp.eq.s32.totalorder %s23, 2
    %p281 = por %p279, %p280
    %p282 = scmp.ne.s32.totalorder %s271, %s272
    %p283 = scmp.eq.s32.totalorder %s23, 0
    %p284 = por %p282, %p283
    %p285 = scmp.ne.s32.totalorder %s271, %s272
    %p286 = scmp.eq.s32.totalorder %s24, 2
    %p287 = por %p285, %p286
    %p289 = scmp.ne.s32.totalorder %s272, %s288
    %p290 = scmp.eq.s32.totalorder %s24, 0
    %p291 = por %p289, %p290
    %s292 = ssub.s32 %s18, %s25
    %p293 = scmp.eq.s32.totalorder %s292, 0
    %s295 = sadd.s32 %s294, 1
    %s296 = scalar_select %p293, %s294, %s295
    %p299 = pneg %p293
    %p300 = scmp.eq.s32.totalorder %s18, 2
    %p301 = por %p299, %p300
    %p302 = scmp.ne.s32.totalorder %s294, %s297
    %p303 = scmp.eq.s32.totalorder %s18, 0
    %p304 = por %p302, %p303
    %p305 = scmp.ne.s32.totalorder %s294, %s297
    %p306 = scmp.eq.s32.totalorder %s23, 2
    %p307 = por %p305, %p306
    %p308 = scmp.ne.s32.totalorder %s297, %s298
    %p309 = scmp.eq.s32.totalorder %s23, 0
    %p310 = por %p308, %p309
    %p311 = scmp.ne.s32.totalorder %s297, %s298
    %p312 = scmp.eq.s32.totalorder %s24, 2
    %p313 = por %p311, %p312
    %p315 = scmp.ne.s32.totalorder %s298, %s314
    %p316 = scmp.eq.s32.totalorder %s24, 0
    %p317 = por %p315, %p316
    %p318 = scmp.le.s32.totalorder 1, %s18
    %p319 = scmp.lt.s32.totalorder %s18, 4
    %p320 = pnand %p318, %p319
    %p321 = pneg %p320
    // Predicated region
    $region9: #{reltr_forward.4} parent=5 // pred_check
      _
    $region10: #{reltr_forward.4} parent=5 // pred_check_branch
      %323 = sbr.rel (%p320) target = $region12
    $region11: #{reltr_forward.4} parent=5 // pred_region
      %s324 = ssub.s32 %s18, 1
      // Predicated region
      $region13: #{reltr_forward.4} parent=11 // pred_check
        %p325 = pneg %p39
      $region14: #{reltr_forward.4} parent=11 // pred_check_branch
        %327 = sbr.rel (%p325) target = $region16
      $region15: #{reltr_forward.4} parent=11 // pred_region
        _
      $region16: #{reltr_forward.4} parent=11 // pred_fallthru
        _
      // Predicated region
      $region17: #{reltr_forward.4} parent=11 // pred_check
        %p328 = pneg %p60
      $region18: #{reltr_forward.4} parent=11 // pred_check_branch
        %330 = sbr.rel (%p328) target = $region20
      $region19: #{reltr_forward.4} parent=11 // pred_region
        _
      $region20: #{reltr_forward.4} parent=11 // pred_fallthru
        _
      // Predicated region
      $region21: #{reltr_forward.4} parent=11 // pred_check
        %p331 = pneg %p81
      $region22: #{reltr_forward.4} parent=11 // pred_check_branch
        %333 = sbr.rel (%p331) target = $region24
      $region23: #{reltr_forward.4} parent=11 // pred_region
        _
      $region24: #{reltr_forward.4} parent=11 // pred_fallthru
        _
      // Predicated region
      $region25: #{reltr_forward.4} parent=11 // pred_check
        %p334 = pneg %p102
      $region26: #{reltr_forward.4} parent=11 // pred_check_branch
        %336 = sbr.rel (%p334) target = $region28
      $region27: #{reltr_forward.4} parent=11 // pred_region
        _
      $region28: #{reltr_forward.4} parent=11 // pred_fallthru
        _
    $region12: #{reltr_forward.4} parent=5 // pred_fallthru
      _
    %p337 = scmp.lt.s32.totalorder %s18, 3
    // Predicated region
    $region29: #{reltr_forward.4} parent=5 // pred_check
      %p338 = pneg %p337
    $region30: #{reltr_forward.4} parent=5 // pred_check_branch
      %340 = sbr.rel (%p338) target = $region32
    $region31: #{reltr_forward.4} parent=5 // pred_region
      // Predicated region
      $region33: #{reltr_forward.4} parent=31 // pred_check
        %p341 = pneg %p122
      $region34: #{reltr_forward.4} parent=31 // pred_check_branch
        %343 = sbr.rel (%p341) target = $region36
      $region35: #{reltr_forward.4} parent=31 // pred_region
        %p344 = scmp.lt.s32.totalorder %s18, 2
        %s345 = scalar_select %p344, %s18, 2
        %s346 = smul.addr %s345, 4
        %s347 = smul.addr %s346, 8
        %s348 = scalar_lea.vmem %s4, %s347
      $region36: #{reltr_forward.4} parent=31 // pred_fallthru
        _
      // Predicated region
      $region37: #{reltr_forward.4} parent=31 // pred_check
        %p349 = pneg %p148
      $region38: #{reltr_forward.4} parent=31 // pred_check_branch
        %351 = sbr.rel (%p349) target = $region40
      $region39: #{reltr_forward.4} parent=31 // pred_region
        %p352 = scmp.lt.s32.totalorder %s18, 2
        %s353 = scalar_select %p352, %s18, 2
        %s354 = scalar_lea.vmem %s5, %s353
      $region40: #{reltr_forward.4} parent=31 // pred_fallthru
        _
      // Predicated region
      $region41: #{reltr_forward.4} parent=31 // pred_check
        %p355 = pneg %p174
      $region42: #{reltr_forward.4} parent=31 // pred_check_branch
        %357 = sbr.rel (%p355) target = $region44
      $region43: #{reltr_forward.4} parent=31 // pred_region
        %p358 = scmp.lt.s32.totalorder %s18, 2
        %s359 = scalar_select %p358, %s18, 2
        %s360 = smul.addr %s359, 4
        %s361 = smul.addr %s360, 8
        %s362 = scalar_lea.vmem %s6, %s361
      $region44: #{reltr_forward.4} parent=31 // pred_fallthru
        _
      // Predicated region
      $region45: #{reltr_forward.4} parent=31 // pred_check
        %p363 = pneg %p200
      $region46: #{reltr_forward.4} parent=31 // pred_check_branch
        %365 = sbr.rel (%p363) target = $region48
      $region47: #{reltr_forward.4} parent=31 // pred_region
        %p366 = scmp.lt.s32.totalorder %s18, 2
        %s367 = scalar_select %p366, %s18, 2
        %s368 = scalar_lea.vmem %s7, %s367
      $region48: #{reltr_forward.4} parent=31 // pred_fallthru
        _
      // Predicated region
      $region49: #{reltr_forward.4} parent=31 // pred_check
        %p369 = pneg %p226
      $region50: #{reltr_forward.4} parent=31 // pred_check_branch
        %371 = sbr.rel (%p369) target = $region52
      $region51: #{reltr_forward.4} parent=31 // pred_region
        %p372 = scmp.lt.s32.totalorder %s18, 2
        %s373 = scalar_select %p372, %s18, 2
        %s374 = smul.addr %s373, 4
        %s375 = smul.addr %s374, 8
        %s376 = scalar_lea.vmem %s8, %s375
      $region52: #{reltr_forward.4} parent=31 // pred_fallthru
        _
      // Predicated region
      $region53: #{reltr_forward.4} parent=31 // pred_check
        %p377 = pneg %p252
      $region54: #{reltr_forward.4} parent=31 // pred_check_branch
        %379 = sbr.rel (%p377) target = $region56
      $region55: #{reltr_forward.4} parent=31 // pred_region
        %p380 = scmp.lt.s32.totalorder %s18, 2
        %s381 = scalar_select %p380, %s18, 2
        %s382 = scalar_lea.vmem %s9, %s381
      $region56: #{reltr_forward.4} parent=31 // pred_fallthru
        _
    $region32: #{reltr_forward.4} parent=5 // pred_fallthru
      _
    %p383 = scmp.le.s32.totalorder 1, %s18
    %p384 = scmp.lt.s32.totalorder %s18, 4
    %p385 = pnand %p383, %p384
    %p386 = pneg %p385
    // Predicated region
    $region57: #{reltr_forward.4} parent=5 // pred_check
      _
    $region58: #{reltr_forward.4} parent=5 // pred_check_branch
      %388 = sbr.rel (%p385) target = $region60
    $region59: #{reltr_forward.4} parent=5 // pred_region
      %s389 = ssub.s32 %s18, 1
      %p390 = pneg %p39
      %p391 = pneg %p36
      %p392 = pneg %p60
      %p393 = pneg %p57
      %p394 = pneg %p81
      %p395 = pneg %p78
      %p396 = pneg %p102
      %p397 = pneg %p99
      %p398 = scmp.lt.s32.totalorder %s23, 2
      %s399 = scalar_select %p398, %s23, 2
      %s400 = smul.addr %s399, 4
      %s401 = smul.addr %s400, 8
      %s402 = scalar_lea.vmem %s4, %s401
      %p403 = pneg %p128
      %p404 = pneg %p125
      %p405 = scmp.lt.s32.totalorder %s23, 2
      %s406 = scalar_select %p405, %s23, 2
      %s407 = scalar_lea.vmem %s5, %s406
      %p408 = pneg %p154
      %p409 = pneg %p151
      %p410 = scmp.lt.s32.totalorder %s23, 2
      %s411 = scalar_select %p410, %s23, 2
      %s412 = smul.addr %s411, 4
      %s413 = smul.addr %s412, 8
      %s414 = scalar_lea.vmem %s6, %s413
      %p415 = pneg %p180
      %p416 = pneg %p177
      %p417 = scmp.lt.s32.totalorder %s23, 2
      %s418 = scalar_select %p417, %s23, 2
      %s419 = scalar_lea.vmem %s7, %s418
      %p420 = pneg %p206
      %p421 = pneg %p203
      %p422 = scmp.lt.s32.totalorder %s23, 2
      %s423 = scalar_select %p422, %s23, 2
      %s424 = smul.addr %s423, 4
      %s425 = smul.addr %s424, 8
      %s426 = scalar_lea.vmem %s8, %s425
      %p427 = pneg %p232
      %p428 = pneg %p229
      %p429 = scmp.lt.s32.totalorder %s23, 2
      %s430 = scalar_select %p429, %s23, 2
      %s431 = scalar_lea.vmem %s9, %s430
      %p432 = pneg %p258
      %p433 = pneg %p255
      %p434 = pneg %p284
      %p435 = pneg %p281
      %p436 = scmp.lt.s32.totalorder %s23, 2
      %s437 = scalar_select %p436, %s23, 2
      %s438 = smul.addr %s437, 2
      %s439 = smul.addr %s438, 8
      %s440 = scalar_lea.vmem %s10, %s439
      %p441 = pneg %p310
      %p442 = pneg %p307
      %p443 = scmp.lt.s32.totalorder %s23, 2
      %s444 = scalar_select %p443, %s23, 2
      %s445 = smul.addr %s444, 2
      %s446 = smul.addr %s445, 8
      %s447 = scalar_lea.vmem %s11, %s446
      %p448 = scmp.lt.s32.totalorder %s23, 2
      %s449 = scalar_select %p448, %s23, 2
      %s450 = smul.addr %s449, 4
      %s451 = smul.addr %s450, 8
      %s452 = scalar_lea.vmem %s4, %s451
      %p453 = scmp.lt.s32.totalorder %s23, 2
      %s454 = scalar_select %p453, %s23, 2
      %s455 = scalar_lea.vmem %s5, %s454
      %p456 = scmp.lt.s32.totalorder %s23, 2
      %s457 = scalar_select %p456, %s23, 2
      %s458 = smul.addr %s457, 4
      %s459 = smul.addr %s458, 8
      %s460 = scalar_lea.vmem %s6, %s459
      %p461 = scmp.lt.s32.totalorder %s23, 2
      %s462 = scalar_select %p461, %s23, 2
      %s463 = scalar_lea.vmem %s7, %s462
      %p464 = scmp.lt.s32.totalorder %s23, 2
      %s465 = scalar_select %p464, %s23, 2
      %s466 = smul.addr %s465, 4
      %s467 = smul.addr %s466, 8
      %s468 = scalar_lea.vmem %s8, %s467
      %p469 = scmp.lt.s32.totalorder %s23, 2
      %s470 = scalar_select %p469, %s23, 2
      %s471 = scalar_lea.vmem %s9, %s470
      %p472 = scmp.lt.s32.totalorder %s23, 2
      %s473 = scalar_select %p472, %s23, 2
      %s474 = smul.addr %s473, 2
      %s475 = smul.addr %s474, 8
      %s476 = scalar_lea.vmem %s10, %s475
      %p477 = scmp.lt.s32.totalorder %s23, 2
      %s478 = scalar_select %p477, %s23, 2
      %s479 = smul.addr %s478, 2
      %s480 = smul.addr %s479, 8
      %s481 = scalar_lea.vmem %s11, %s480
      %v483 = vld [vmem:[%s0] sm:$0xff]
      %v484 = vpack.c.bf16 %v483, %v483
      %v485 = vld [vmem:[%s452] sm:$0xff]
      %v486 = vld [vmem:[%s452 + $0x8] sm:$0xff]
      %v487 = vld [vmem:[%s452 + $0x10] sm:$0xff]
      %v488 = vld [vmem:[%s452 + $0x18] sm:$0xff]
      %v489 = vpack.c.bf16 %v486, %v485
      %v490 = vpack.c.bf16 %v488, %v487
      %v491 = vld [vmem:[%s455] sm:$0x1]
      %v493 = vlaneseq
      %v494 = vshrl.u32 %v493, 7
      %v495 = vsub.s32 0, %v494
      %v496 = vrot.slane %v491, %v495
      %vm498 = vcmask 261120
      %v500 = vsel %vm498, %v484, 0
      %502 = vmatprep.subr.bf16.mxu0 0
      %503 = vmatpush1.bf16.msra.mxu0 0
      %504 = vmatprep.subr.bf16.mxu0 0
      %505 = vmatpush1.bf16.msra.mxu0 0
      %506 = vmatprep.subr.bf16.mxu0 0
      %507 = vmatpush1.bf16.msra.mxu0 0
      %508 = vmatprep.subr.bf16.mxu0 0
      %509 = vmatpush1.bf16.msra.mxu0 0
      %510 = vmatprep.subr.bf16.mxu0 0
      %511 = vmatpush1.bf16.msra.mxu0 0
      %512 = vmatprep.subr.bf16.mxu0 0
      %513 = vmatpush1.bf16.msra.mxu0 0
      %514 = vmatprep.subr.bf16.mxu0 0
      %515 = vmatpush1.bf16.msra.mxu0 %v490
      %516 = vmatprep.subr.bf16.mxu0 0
      %517 = vmatpush1.bf16.msra.mxu0 %v489
      %518 = vmatprep.subr.bf16.mxu0 0
      %519 = vmatpush2.bf16.msra.mxu0 0
      %520 = vmatprep.subr.bf16.mxu0 0
      %521 = vmatpush2.bf16.msra.mxu0 0
      %522 = vmatprep.subr.bf16.mxu0 0
      %523 = vmatpush2.bf16.msra.mxu0 0
      %524 = vmatprep.subr.bf16.mxu0 0
      %525 = vmatpush2.bf16.msra.mxu0 0
      %526 = vmatprep.subr.bf16.mxu0 0
      %527 = vmatpush2.bf16.msra.mxu0 0
      %528 = vmatprep.subr.bf16.mxu0 0
      %529 = vmatpush2.bf16.msra.mxu0 0
      %530 = vmatprep.subr.bf16.mxu0 0
      %531 = vmatpush2.bf16.msra.mxu0 0
      %532 = vmatprep.subr.bf16.mxu0 0
      %533 = vmatpush2.bf16.msra.mxu0 0
      %534 = vmatprep.mubr.bf16.mxu0 0
      %535 = vmatmul.mubr.bf16.gmra.mxu0 %v500
      %v536 = vpop.f32.mrf.mxu0
      %v537 = vadd.f32 %v496, %v536
      %v538 = vpop.f32.mrf.mxu0
      %v539 = vpop.f32.mrf.mxu0
      %v540 = vpop.f32.mrf.mxu0
      %541 = vdwg.mxu0
      %v542 = vld [vmem:[%s1] sm:$0xff]
      %v543 = vpack.c.bf16 %v542, %v542
      %v544 = vld [vmem:[%s460] sm:$0xff]
      %v545 = vld [vmem:[%s460 + $0x8] sm:$0xff]
      %v546 = vld [vmem:[%s460 + $0x10] sm:$0xff]
      %v547 = vld [vmem:[%s460 + $0x18] sm:$0xff]
      %v548 = vpack.c.bf16 %v545, %v544
      %v549 = vpack.c.bf16 %v547, %v546
      %v550 = vld [vmem:[%s463] sm:$0x1]
      %v552 = vlaneseq
      %v553 = vshrl.u32 %v552, 7
      %v554 = vsub.s32 0, %v553
      %v555 = vrot.slane %v550, %v554
      %v558 = vsel %vm498, %v543, 0
      %560 = vmatprep.subr.bf16.mxu0 0
      %561 = vmatpush1.bf16.msra.mxu0 0
      %562 = vmatprep.subr.bf16.mxu0 0
      %563 = vmatpush1.bf16.msra.mxu0 0
      %564 = vmatprep.subr.bf16.mxu0 0
      %565 = vmatpush1.bf16.msra.mxu0 0
      %566 = vmatprep.subr.bf16.mxu0 0
      %567 = vmatpush1.bf16.msra.mxu0 0
      %568 = vmatprep.subr.bf16.mxu0 0
      %569 = vmatpush1.bf16.msra.mxu0 0
      %570 = vmatprep.subr.bf16.mxu0 0
      %571 = vmatpush1.bf16.msra.mxu0 0
      %572 = vmatprep.subr.bf16.mxu0 0
      %573 = vmatpush1.bf16.msra.mxu0 %v549
      %574 = vmatprep.subr.bf16.mxu0 0
      %575 = vmatpush1.bf16.msra.mxu0 %v548
      %576 = vmatprep.subr.bf16.mxu0 0
      %577 = vmatpush2.bf16.msra.mxu0 0
      %578 = vmatprep.subr.bf16.mxu0 0
      %579 = vmatpush2.bf16.msra.mxu0 0
      %580 = vmatprep.subr.bf16.mxu0 0
      %581 = vmatpush2.bf16.msra.mxu0 0
      %582 = vmatprep.subr.bf16.mxu0 0
      %583 = vmatpush2.bf16.msra.mxu0 0
      %584 = vmatprep.subr.bf16.mxu0 0
      %585 = vmatpush2.bf16.msra.mxu0 0
      %586 = vmatprep.subr.bf16.mxu0 0
      %587 = vmatpush2.bf16.msra.mxu0 0
      %588 = vmatprep.subr.bf16.mxu0 0
      %589 = vmatpush2.bf16.msra.mxu0 0
      %590 = vmatprep.subr.bf16.mxu0 0
      %591 = vmatpush2.bf16.msra.mxu0 0
      %592 = vmatprep.mubr.bf16.mxu0 0
      %593 = vmatmul.mubr.bf16.gmra.mxu0 %v558
      %v594 = vpop.f32.mrf.mxu0
      %v595 = vadd.f32 %v555, %v594
      %v596 = vpop.f32.mrf.mxu0
      %v597 = vpop.f32.mrf.mxu0
      %v598 = vpop.f32.mrf.mxu0
      %599 = vdwg.mxu0
      %v600 = vld [vmem:[%s2] sm:$0xff]
      %v601 = vpack.c.bf16 %v600, %v600
      %v602 = vld [vmem:[%s468] sm:$0xff]
      %v603 = vld [vmem:[%s468 + $0x8] sm:$0xff]
      %v604 = vld [vmem:[%s468 + $0x10] sm:$0xff]
      %v605 = vld [vmem:[%s468 + $0x18] sm:$0xff]
      %v606 = vpack.c.bf16 %v603, %v602
      %v607 = vpack.c.bf16 %v605, %v604
      %v608 = vld [vmem:[%s471] sm:$0x1]
      %v610 = vlaneseq
      %v611 = vshrl.u32 %v610, 7
      %v612 = vsub.s32 0, %v611
      %v613 = vrot.slane %v608, %v612
      %v616 = vsel %vm498, %v601, 0
      %618 = vmatprep.subr.bf16.mxu0 0
      %619 = vmatpush1.bf16.msra.mxu0 0
      %620 = vmatprep.subr.bf16.mxu0 0
      %621 = vmatpush1.bf16.msra.mxu0 0
      %622 = vmatprep.subr.bf16.mxu0 0
      %623 = vmatpush1.bf16.msra.mxu0 0
      %624 = vmatprep.subr.bf16.mxu0 0
      %625 = vmatpush1.bf16.msra.mxu0 0
      %626 = vmatprep.subr.bf16.mxu0 0
      %627 = vmatpush1.bf16.msra.mxu0 0
      %628 = vmatprep.subr.bf16.mxu0 0
      %629 = vmatpush1.bf16.msra.mxu0 0
      %630 = vmatprep.subr.bf16.mxu0 0
      %631 = vmatpush1.bf16.msra.mxu0 %v607
      %632 = vmatprep.subr.bf16.mxu0 0
      %633 = vmatpush1.bf16.msra.mxu0 %v606
      %634 = vmatprep.subr.bf16.mxu0 0
      %635 = vmatpush2.bf16.msra.mxu0 0
      %636 = vmatprep.subr.bf16.mxu0 0
      %637 = vmatpush2.bf16.msra.mxu0 0
      %638 = vmatprep.subr.bf16.mxu0 0
      %639 = vmatpush2.bf16.msra.mxu0 0
      %640 = vmatprep.subr.bf16.mxu0 0
      %641 = vmatpush2.bf16.msra.mxu0 0
      %642 = vmatprep.subr.bf16.mxu0 0
      %643 = vmatpush2.bf16.msra.mxu0 0
      %644 = vmatprep.subr.bf16.mxu0 0
      %645 = vmatpush2.bf16.msra.mxu0 0
      %646 = vmatprep.subr.bf16.mxu0 0
      %647 = vmatpush2.bf16.msra.mxu0 0
      %648 = vmatprep.subr.bf16.mxu0 0
      %649 = vmatpush2.bf16.msra.mxu0 0
      %650 = vmatprep.mubr.bf16.mxu0 0
      %651 = vmatmul.mubr.bf16.gmra.mxu0 %v616
      %v652 = vpop.f32.mrf.mxu0
      %v653 = vadd.f32 %v613, %v652
      %v654 = vpop.f32.mrf.mxu0
      %v655 = vpop.f32.mrf.mxu0
      %v656 = vpop.f32.mrf.mxu0
      %657 = vdwg.mxu0
      %v658 = vld [vmem:[%s3] sm:$0x1]
      %v659 = vlaneseq
      %v660 = vshrl.u32 %v659, 7
      %v661 = vsub.s32 0, %v660
      %v662 = vrot.slane %v658, %v661
      %v663 = vadd.f32 %v537, %v662
      %v664 = vtanh.pop %v663
      %665 = vst.msk [vmem:[%s476] sm:$0xff] %vm498, %v664
      %v666 = vadd.f32 %v595, %v662
      %v667 = vtanh.pop %v666
      %v668 = vadd.f32 %v653, %v662
      %v669 = vtanh.pop %v668
      %671 = vrot.lane.b32.xlu0 %v669, 32
      %v672 = vpop.permute.xlu0 %671
      %v674 = vsel %vm498, %v667, %v672
      %vm675 = vcmask 523264
      %676 = vst.msk [vmem:[%s481] sm:$0xff] %vm675, %v674
      %v677 = vld [vmem:[%s3 + $0x1] sm:$0x1]
      %v678 = vlaneseq
      %v679 = vshrl.u32 %v678, 7
      %v680 = vsub.s32 0, %v679
      %v681 = vrot.slane %v677, %v680
      %v682 = vadd.f32 %v537, %v681
      %v683 = vtanh.pop %v682
      %s684 = scalar_lea.vmem %s476, 8
      %685 = vst.msk [vmem:[%s684] sm:$0xff] %vm498, %v683
      %v686 = vadd.f32 %v595, %v681
      %v687 = vtanh.pop %v686
      %v688 = vadd.f32 %v653, %v681
      %v689 = vtanh.pop %v688
      %691 = vrot.lane.b32.xlu0 %v689, 32
      %v692 = vpop.permute.xlu0 %691
      %v694 = vsel %vm498, %v687, %v692
      %s695 = scalar_lea.vmem %s481, 8
      %696 = vst.msk [vmem:[%s695] sm:$0xff] %vm675, %v694
      %p697 = scmp.lt.s32.totalorder %s23, 2
      %s698 = scalar_select %p697, %s23, 2
      %s699 = smul.addr %s698, 2
      %s700 = smul.addr %s699, 8
      %s701 = scalar_lea.vmem %s10, %s700
      %p702 = scmp.lt.s32.totalorder %s23, 2
      %s703 = scalar_select %p702, %s23, 2
      %s704 = smul.addr %s703, 2
      %s705 = smul.addr %s704, 8
      %s706 = scalar_lea.vmem %s11, %s705
      // Predicated region
      $region61: #{reltr_forward.4} parent=59 // pred_check
        %p707 = pneg %p281
      $region62: #{reltr_forward.4} parent=59 // pred_check_branch
        %709 = sbr.rel (%p707) target = $region64
      $region63: #{reltr_forward.4} parent=59 // pred_region
        _
      $region64: #{reltr_forward.4} parent=59 // pred_fallthru
        _
      // Predicated region
      $region65: #{reltr_forward.4} parent=59 // pred_check
        %p710 = pneg %p307
      $region66: #{reltr_forward.4} parent=59 // pred_check_branch
        %712 = sbr.rel (%p710) target = $region68
      $region67: #{reltr_forward.4} parent=59 // pred_region
        _
      $region68: #{reltr_forward.4} parent=59 // pred_fallthru
        _
    $region60: #{reltr_forward.4} parent=5 // pred_fallthru
      _
    %p713 = scmp.le.s32.totalorder 2, %s18
    // Predicated region
    $region69: #{reltr_forward.4} parent=5 // pred_check
      %p714 = pneg %p713
    $region70: #{reltr_forward.4} parent=5 // pred_check_branch
      %716 = sbr.rel (%p714) target = $region72
    $region71: #{reltr_forward.4} parent=5 // pred_region
      %s717 = ssub.s32 %s18, 2
      // Predicated region
      $region73: #{reltr_forward.4} parent=71 // pred_check
        %p718 = pneg %p287
      $region74: #{reltr_forward.4} parent=71 // pred_check_branch
        %720 = sbr.rel (%p718) target = $region76
      $region75: #{reltr_forward.4} parent=71 // pred_region
        %p721 = scmp.lt.s32.totalorder %s24, 2
        %s722 = scalar_select %p721, %s24, 2
        %s723 = smul.addr %s722, 2
        %s724 = smul.addr %s723, 8
        %s725 = scalar_lea.vmem %s10, %s724
      $region76: #{reltr_forward.4} parent=71 // pred_fallthru
        _
      // Predicated region
      $region77: #{reltr_forward.4} parent=71 // pred_check
        %p726 = pneg %p313
      $region78: #{reltr_forward.4} parent=71 // pred_check_branch
        %728 = sbr.rel (%p726) target = $region80
      $region79: #{reltr_forward.4} parent=71 // pred_region
        %p729 = scmp.lt.s32.totalorder %s24, 2
        %s730 = scalar_select %p729, %s24, 2
        %s731 = smul.addr %s730, 2
        %s732 = smul.addr %s731, 8
        %s733 = scalar_lea.vmem %s11, %s732
      $region80: #{reltr_forward.4} parent=71 // pred_fallthru
        _
    $region72: #{reltr_forward.4} parent=5 // pred_fallthru
      _
  $region6: #{reltr_forward.4} parent=0 // loop_footer
    %s22 = sadd.s32 1, %s18
  $region7: #{reltr_forward.4} parent=0 // loop_footer_branch
    %17 = sbr.rel target = $region3
  $region8: #{reltr_forward.4} parent=0 // loop_exit
    _

// kernel: reltr_forward.3
$region0: #{reltr_forward.3}
  #allocation0 [shape = 'u32[]', space=smem, size = 0x4, offset = 0x4, fixed_abs, tag = 'smem constant byte address 0x4 - core index']
  #allocation1 [shape = 'u32[144,128]{1,0:T(1,128)}', space=vmem, size = 0x12000, scoped, tag = 'internal scratch']
  %s0 = inlined_call_operand.vmem [shape: f32[2,3,256], index: 0, kind: input, shape index: {}]
  %s1 = inlined_call_operand.vmem [shape: f32[2,32,256], index: 1, kind: input, shape index: {}]
  %s2 = inlined_call_operand.vmem [shape: f32[16,32], index: 2, kind: input, shape index: {}]
  %s3 = inlined_call_operand.vmem [shape: f32[8,3], index: 3, kind: input, shape index: {}]
  %s4 = inlined_call_operand.vmem [shape: f32[8,1], index: 4, kind: input, shape index: {}]
  %s5 = inlined_call_operand.vmem [shape: f32[32,8], index: 5, kind: input, shape index: {}]
  %s6 = inlined_call_operand.vmem [shape: f32[32,1], index: 6, kind: input, shape index: {}]
  %s7 = inlined_call_operand.vmem [shape: f32[2,32,1], index: 7, kind: output, shape index: {0}]
  %s8 = inlined_call_operand.vmem [shape: f32[2,16,256], index: 8, kind: output, shape index: {1}]
  %9 = xla_tuple %s7, %s8
  %s10 = sld [smem:[#allocation0]]
  $region69: #{reltr_forward.3} parent=0
    _
  %s12 = ssub.s32 1, %s10
  %s13 = scalar_select 0, %s12, %s10
  loop: start=0, step=1, limit=4
  $region2: #{reltr_forward.3} parent=0 // loop_pre_header
    _
  $region3: #{reltr_forward.3} parent=0 // loop_header
    %s15 = sphi 0, %s19
    %p16 = scmp.ge.s32.totalorder %s15, 4
    %s25 = sphi 0, %s27
    %s28 = sphi 0, %s25
    %s29 = sphi 0, %s28
    %s45 = sphi 0, %s29
    %s51 = sphi 0, %s53
    %s54 = sphi 0, %s51
    %s55 = sphi 0, %s54
    %s71 = sphi 0, %s55
    %s75 = sphi 0, %s75
    %s77 = sphi 0, %s75
    %s78 = sphi 0, %s77
    %s92 = sphi 0, %s78
    %s96 = sphi 0, %s96
    %s98 = sphi 0, %s96
    %s99 = sphi 0, %s98
    %s113 = sphi 0, %s99
    %s117 = sphi 0, %s117
    %s119 = sphi 0, %s117
    %s120 = sphi 0, %s119
    %s134 = sphi 0, %s120
    %s138 = sphi 0, %s138
    %s140 = sphi 0, %s138
    %s141 = sphi 0, %s140
    %s155 = sphi 0, %s141
    %s159 = sphi 0, %s159
    %s161 = sphi 0, %s159
    %s162 = sphi 0, %s161
    %s176 = sphi 0, %s162
    %s182 = sphi 0, %s184
    %s185 = sphi 0, %s182
    %s186 = sphi 0, %s185
    %s202 = sphi 0, %s186
    %s208 = sphi 0, %s210
    %s211 = sphi 0, %s208
    %s212 = sphi 0, %s211
    %s228 = sphi 0, %s212
  $region4: #{reltr_forward.3} parent=0 // loop_header_branch
    %18 = sbr.rel (%p16) target = $region8
  $region5: #{reltr_forward.3} parent=0 // loop_body
    %s20 = ssub.s32 %s15, 1
    %s21 = ssub.s32 %s15, 2
    %s22 = sadd.s32 %s15, 1
    %s23 = ssub.s32 %s15, %s22
    %p24 = scmp.eq.s32.totalorder %s23, 0
    %s26 = sadd.s32 %s25, 1
    %s27 = scalar_select %p24, %s25, %s26
    %p30 = pneg %p24
    %p31 = scmp.eq.s32.totalorder %s15, 1
    %p32 = por %p30, %p31
    %p33 = scmp.ne.s32.totalorder %s25, %s28
    %p34 = scmp.eq.s32.totalorder %s15, 0
    %p35 = por %p33, %p34
    %p36 = scmp.ne.s32.totalorder %s25, %s28
    %p37 = scmp.eq.s32.totalorder %s20, 1
    %p38 = por %p36, %p37
    %p39 = scmp.ne.s32.totalorder %s28, %s29
    %p40 = scmp.eq.s32.totalorder %s20, 0
    %p41 = por %p39, %p40
    %p42 = scmp.ne.s32.totalorder %s28, %s29
    %p43 = scmp.eq.s32.totalorder %s21, 1
    %p44 = por %p42, %p43
    %p46 = scmp.ne.s32.totalorder %s29, %s45
    %p47 = scmp.eq.s32.totalorder %s21, 0
    %p48 = por %p46, %p47
    %s49 = ssub.s32 %s15, %s22
    %p50 = scmp.eq.s32.totalorder %s49, 0
    %s52 = sadd.s32 %s51, 1
    %s53 = scalar_select %p50, %s51, %s52
    %p56 = pneg %p50
    %p57 = scmp.eq.s32.totalorder %s15, 1
    %p58 = por %p56, %p57
    %p59 = scmp.ne.s32.totalorder %s51, %s54
    %p60 = scmp.eq.s32.totalorder %s15, 0
    %p61 = por %p59, %p60
    %p62 = scmp.ne.s32.totalorder %s51, %s54
    %p63 = scmp.eq.s32.totalorder %s20, 1
    %p64 = por %p62, %p63
    %p65 = scmp.ne.s32.totalorder %s54, %s55
    %p66 = scmp.eq.s32.totalorder %s20, 0
    %p67 = por %p65, %p66
    %p68 = scmp.ne.s32.totalorder %s54, %s55
    %p69 = scmp.eq.s32.totalorder %s21, 1
    %p70 = por %p68, %p69
    %p72 = scmp.ne.s32.totalorder %s55, %s71
    %p73 = scmp.eq.s32.totalorder %s21, 0
    %p74 = por %p72, %p73
    %s76 = sadd.s32 %s75, 1
    %p79 = scmp.eq.s32.totalorder %s15, 1
    %p80 = scmp.ne.s32.totalorder %s75, %s77
    %p81 = scmp.eq.s32.totalorder %s15, 0
    %p82 = por %p80, %p81
    %p83 = scmp.ne.s32.totalorder %s75, %s77
    %p84 = scmp.eq.s32.totalorder %s20, 1
    %p85 = por %p83, %p84
    %p86 = scmp.ne.s32.totalorder %s77, %s78
    %p87 = scmp.eq.s32.totalorder %s20, 0
    %p88 = por %p86, %p87
    %p89 = scmp.ne.s32.totalorder %s77, %s78
    %p90 = scmp.eq.s32.totalorder %s21, 1
    %p91 = por %p89, %p90
    %p93 = scmp.ne.s32.totalorder %s78, %s92
    %p94 = scmp.eq.s32.totalorder %s21, 0
    %p95 = por %p93, %p94
    %s97 = sadd.s32 %s96, 1
    %p100 = scmp.eq.s32.totalorder %s15, 1
    %p101 = scmp.ne.s32.totalorder %s96, %s98
    %p102 = scmp.eq.s32.totalorder %s15, 0
    %p103 = por %p101, %p102
    %p104 = scmp.ne.s32.totalorder %s96, %s98
    %p105 = scmp.eq.s32.totalorder %s20, 1
    %p106 = por %p104, %p105
    %p107 = scmp.ne.s32.totalorder %s98, %s99
    %p108 = scmp.eq.s32.totalorder %s20, 0
    %p109 = por %p107, %p108
    %p110 = scmp.ne.s32.totalorder %s98, %s99
    %p111 = scmp.eq.s32.totalorder %s21, 1
    %p112 = por %p110, %p111
    %p114 = scmp.ne.s32.totalorder %s99, %s113
    %p115 = scmp.eq.s32.totalorder %s21, 0
    %p116 = por %p114, %p115
    %s118 = sadd.s32 %s117, 1
    %p121 = scmp.eq.s32.totalorder %s15, 1
    %p122 = scmp.ne.s32.totalorder %s117, %s119
    %p123 = scmp.eq.s32.totalorder %s15, 0
    %p124 = por %p122, %p123
    %p125 = scmp.ne.s32.totalorder %s117, %s119
    %p126 = scmp.eq.s32.totalorder %s20, 1
    %p127 = por %p125, %p126
    %p128 = scmp.ne.s32.totalorder %s119, %s120
    %p129 = scmp.eq.s32.totalorder %s20, 0
    %p130 = por %p128, %p129
    %p131 = scmp.ne.s32.totalorder %s119, %s120
    %p132 = scmp.eq.s32.totalorder %s21, 1
    %p133 = por %p131, %p132
    %p135 = scmp.ne.s32.totalorder %s120, %s134
    %p136 = scmp.eq.s32.totalorder %s21, 0
    %p137 = por %p135, %p136
    %s139 = sadd.s32 %s138, 1
    %p142 = scmp.eq.s32.totalorder %s15, 1
    %p143 = scmp.ne.s32.totalorder %s138, %s140
    %p144 = scmp.eq.s32.totalorder %s15, 0
    %p145 = por %p143, %p144
    %p146 = scmp.ne.s32.totalorder %s138, %s140
    %p147 = scmp.eq.s32.totalorder %s20, 1
    %p148 = por %p146, %p147
    %p149 = scmp.ne.s32.totalorder %s140, %s141
    %p150 = scmp.eq.s32.totalorder %s20, 0
    %p151 = por %p149, %p150
    %p152 = scmp.ne.s32.totalorder %s140, %s141
    %p153 = scmp.eq.s32.totalorder %s21, 1
    %p154 = por %p152, %p153
    %p156 = scmp.ne.s32.totalorder %s141, %s155
    %p157 = scmp.eq.s32.totalorder %s21, 0
    %p158 = por %p156, %p157
    %s160 = sadd.s32 %s159, 1
    %p163 = scmp.eq.s32.totalorder %s15, 1
    %p164 = scmp.ne.s32.totalorder %s159, %s161
    %p165 = scmp.eq.s32.totalorder %s15, 0
    %p166 = por %p164, %p165
    %p167 = scmp.ne.s32.totalorder %s159, %s161
    %p168 = scmp.eq.s32.totalorder %s20, 1
    %p169 = por %p167, %p168
    %p170 = scmp.ne.s32.totalorder %s161, %s162
    %p171 = scmp.eq.s32.totalorder %s20, 0
    %p172 = por %p170, %p171
    %p173 = scmp.ne.s32.totalorder %s161, %s162
    %p174 = scmp.eq.s32.totalorder %s21, 1
    %p175 = por %p173, %p174
    %p177 = scmp.ne.s32.totalorder %s162, %s176
    %p178 = scmp.eq.s32.totalorder %s21, 0
    %p179 = por %p177, %p178
    %s180 = ssub.s32 %s15, %s22
    %p181 = scmp.eq.s32.totalorder %s180, 0
    %s183 = sadd.s32 %s182, 1
    %s184 = scalar_select %p181, %s182, %s183
    %p187 = pneg %p181
    %p188 = scmp.eq.s32.totalorder %s15, 1
    %p189 = por %p187, %p188
    %p190 = scmp.ne.s32.totalorder %s182, %s185
    %p191 = scmp.eq.s32.totalorder %s15, 0
    %p192 = por %p190, %p191
    %p193 = scmp.ne.s32.totalorder %s182, %s185
    %p194 = scmp.eq.s32.totalorder %s20, 1
    %p195 = por %p193, %p194
    %p196 = scmp.ne.s32.totalorder %s185, %s186
    %p197 = scmp.eq.s32.totalorder %s20, 0
    %p198 = por %p196, %p197
    %p199 = scmp.ne.s32.totalorder %s185, %s186
    %p200 = scmp.eq.s32.totalorder %s21, 1
    %p201 = por %p199, %p200
    %p203 = scmp.ne.s32.totalorder %s186, %s202
    %p204 = scmp.eq.s32.totalorder %s21, 0
    %p205 = por %p203, %p204
    %s206 = ssub.s32 %s15, %s22
    %p207 = scmp.eq.s32.totalorder %s206, 0
    %s209 = sadd.s32 %s208, 1
    %s210 = scalar_select %p207, %s208, %s209
    %p213 = pneg %p207
    %p214 = scmp.eq.s32.totalorder %s15, 1
    %p215 = por %p213, %p214
    %p216 = scmp.ne.s32.totalorder %s208, %s211
    %p217 = scmp.eq.s32.totalorder %s15, 0
    %p218 = por %p216, %p217
    %p219 = scmp.ne.s32.totalorder %s208, %s211
    %p220 = scmp.eq.s32.totalorder %s20, 1
    %p221 = por %p219, %p220
    %p222 = scmp.ne.s32.totalorder %s211, %s212
    %p223 = scmp.eq.s32.totalorder %s20, 0
    %p224 = por %p222, %p223
    %p225 = scmp.ne.s32.totalorder %s211, %s212
    %p226 = scmp.eq.s32.totalorder %s21, 1
    %p227 = por %p225, %p226
    %p229 = scmp.ne.s32.totalorder %s212, %s228
    %p230 = scmp.eq.s32.totalorder %s21, 0
    %p231 = por %p229, %p230
    %p232 = scmp.le.s32.totalorder 1, %s15
    %p233 = scmp.lt.s32.totalorder %s15, 3
    %p234 = pnand %p232, %p233
    %p235 = pneg %p234
    // Predicated region
    $region9: #{reltr_forward.3} parent=5 // pred_check
      _
    $region10: #{reltr_forward.3} parent=5 // pred_check_branch
      %237 = sbr.rel (%p234) target = $region12
    $region11: #{reltr_forward.3} parent=5 // pred_region
      %s238 = ssub.s32 %s15, 1
      // Predicated region
      $region13: #{reltr_forward.3} parent=11 // pred_check
        %p239 = pneg %p88
      $region14: #{reltr_forward.3} parent=11 // pred_check_branch
        %241 = sbr.rel (%p239) target = $region16
      $region15: #{reltr_forward.3} parent=11 // pred_region
        _
      $region16: #{reltr_forward.3} parent=11 // pred_fallthru
        _
      // Predicated region
      $region17: #{reltr_forward.3} parent=11 // pred_check
        %p242 = pneg %p109
      $region18: #{reltr_forward.3} parent=11 // pred_check_branch
        %244 = sbr.rel (%p242) target = $region20
      $region19: #{reltr_forward.3} parent=11 // pred_region
        _
      $region20: #{reltr_forward.3} parent=11 // pred_fallthru
        _
      // Predicated region
      $region21: #{reltr_forward.3} parent=11 // pred_check
        %p245 = pneg %p130
      $region22: #{reltr_forward.3} parent=11 // pred_check_branch
        %247 = sbr.rel (%p245) target = $region24
      $region23: #{reltr_forward.3} parent=11 // pred_region
        _
      $region24: #{reltr_forward.3} parent=11 // pred_fallthru
        _
      // Predicated region
      $region25: #{reltr_forward.3} parent=11 // pred_check
        %p248 = pneg %p151
      $region26: #{reltr_forward.3} parent=11 // pred_check_branch
        %250 = sbr.rel (%p248) target = $region28
      $region27: #{reltr_forward.3} parent=11 // pred_region
        _
      $region28: #{reltr_forward.3} parent=11 // pred_fallthru
        _
      // Predicated region
      $region29: #{reltr_forward.3} parent=11 // pred_check
        %p251 = pneg %p172
      $region30: #{reltr_forward.3} parent=11 // pred_check_branch
        %253 = sbr.rel (%p251) target = $region32
      $region31: #{reltr_forward.3} parent=11 // pred_region
        _
      $region32: #{reltr_forward.3} parent=11 // pred_fallthru
        _
    $region12: #{reltr_forward.3} parent=5 // pred_fallthru
      _
    %p254 = scmp.lt.s32.totalorder %s15, 2
    // Predicated region
    $region33: #{reltr_forward.3} parent=5 // pred_check
      %p255 = pneg %p254
    $region34: #{reltr_forward.3} parent=5 // pred_check_branch
      %257 = sbr.rel (%p255) target = $region36
    $region35: #{reltr_forward.3} parent=5 // pred_region
      // Predicated region
      $region37: #{reltr_forward.3} parent=35 // pred_check
        %p258 = pneg %p35
      $region38: #{reltr_forward.3} parent=35 // pred_check_branch
        %260 = sbr.rel (%p258) target = $region40
      $region39: #{reltr_forward.3} parent=35 // pred_region
        %p261 = scmp.lt.s32.totalorder %s15, 1
        %s262 = scalar_select %p261, %s15, 1
        %s263 = smul.addr %s262, 2
        %s264 = smul.addr %s263, 4
        %s265 = scalar_lea.vmem %s0, %s264
      $region40: #{reltr_forward.3} parent=35 // pred_fallthru
        _
      // Predicated region
      $region41: #{reltr_forward.3} parent=35 // pred_check
        %p266 = pneg %p61
      $region42: #{reltr_forward.3} parent=35 // pred_check_branch
        %268 = sbr.rel (%p266) target = $region44
      $region43: #{reltr_forward.3} parent=35 // pred_region
        %p269 = scmp.lt.s32.totalorder %s15, 1
        %s270 = scalar_select %p269, %s15, 1
        %s271 = smul.addr %s270, 8
        %s272 = smul.addr %s271, 8
        %s273 = scalar_lea.vmem %s1, %s272
      $region44: #{reltr_forward.3} parent=35 // pred_fallthru
        _
    $region36: #{reltr_forward.3} parent=5 // pred_fallthru
      _
    %p274 = scmp.le.s32.totalorder 1, %s15
    %p275 = scmp.lt.s32.totalorder %s15, 3
    %p276 = pnand %p274, %p275
    %p277 = pneg %p276
    // Predicated region
    $region45: #{reltr_forward.3} parent=5 // pred_check
      _
    $region46: #{reltr_forward.3} parent=5 // pred_check_branch
      %279 = sbr.rel (%p276) target = $region48
    $region47: #{reltr_forward.3} parent=5 // pred_region
      %s280 = ssub.s32 %s15, 1
      %p281 = scmp.lt.s32.totalorder %s20, 1
      %s282 = scalar_select %p281, %s20, 1
      %s283 = smul.addr %s282, 2
      %s284 = smul.addr %s283, 4
      %s285 = scalar_lea.vmem %s0, %s284
      %p286 = pneg %p41
      %p287 = pneg %p38
      %p288 = scmp.lt.s32.totalorder %s20, 1
      %s289 = scalar_select %p288, %s20, 1
      %s290 = smul.addr %s289, 8
      %s291 = smul.addr %s290, 8
      %s292 = scalar_lea.vmem %s1, %s291
      %p293 = pneg %p67
      %p294 = pneg %p64
      %p295 = pneg %p88
      %p296 = pneg %p85
      %p297 = pneg %p109
      %p298 = pneg %p106
      %p299 = pneg %p130
      %p300 = pneg %p127
      %p301 = pneg %p151
      %p302 = pneg %p148
      %p303 = pneg %p172
      %p304 = pneg %p169
      %p305 = pneg %p198
      %p306 = pneg %p195
      %p307 = scmp.lt.s32.totalorder %s20, 1
      %s308 = scalar_select %p307, %s20, 1
      %s309 = smul.addr %s308, 4
      %s310 = smul.addr %s309, 8
      %s311 = scalar_lea.vmem %s7, %s310
      %p312 = pneg %p224
      %p313 = pneg %p221
      %p314 = scmp.lt.s32.totalorder %s20, 1
      %s315 = scalar_select %p314, %s20, 1
      %s316 = smul.addr %s315, 4
      %s317 = smul.addr %s316, 8
      %s318 = scalar_lea.vmem %s8, %s317
      %p319 = scmp.lt.s32.totalorder %s20, 1
      %s320 = scalar_select %p319, %s20, 1
      %s321 = smul.addr %s320, 2
      %s322 = smul.addr %s321, 4
      %s323 = scalar_lea.vmem %s0, %s322
      %p324 = scmp.lt.s32.totalorder %s20, 1
      %s325 = scalar_select %p324, %s20, 1
      %s326 = smul.addr %s325, 8
      %s327 = smul.addr %s326, 8
      %s328 = scalar_lea.vmem %s1, %s327
      %p329 = scmp.lt.s32.totalorder %s20, 1
      %s330 = scalar_select %p329, %s20, 1
      %s331 = smul.addr %s330, 4
      %s332 = smul.addr %s331, 8
      %s333 = scalar_lea.vmem %s7, %s332
      %p334 = scmp.lt.s32.totalorder %s20, 1
      %s335 = scalar_select %p334, %s20, 1
      %s336 = smul.addr %s335, 4
      %s337 = smul.addr %s336, 8
      %s338 = scalar_lea.vmem %s8, %s337
      %v340 = vld [vmem:[%s323] sm:$0x77]
      %v341 = vld [vmem:[%s3] sm:$0xff]
      %v342 = vld [vmem:[%s4] sm:$0xff]
      %344 = vset.pattern.permute.xlu0 0
      %345 = vperm.xlu0 %344, %v342
      %v346 = vpop.permute.xlu0 %345
      %v349 = vcombine.high %v340, %v340
      %vm350 = vcmask 23552
      %v352 = vsel %vm350, %v341, 0
      %vm354 = vcmask 1042432
      %v355 = vsel %vm354, %v340, 0
      %v357 = vsel %vm354, %v349, 0
      %359 = vmatprep.subr.mxu0 0.0
      %360 = vmatpush1.msra.mxu0 0.0
      %361 = vmatprep.subr.mxu0 0.0
      %362 = vmatpush1.msra.mxu0 0.0
      %363 = vmatprep.subr.mxu0 0.0
      %364 = vmatpush1.msra.mxu0 0.0
      %365 = vmatprep.subr.mxu0 0.0
      %366 = vmatpush1.msra.mxu0 0.0
      %367 = vmatprep.subr.mxu0 0.0
      %368 = vmatpush1.msra.mxu0 0.0
      %369 = vmatprep.subr.mxu0 0.0
      %370 = vmatpush1.msra.mxu0 0.0
      %371 = vmatprep.subr.mxu0 0.0
      %372 = vmatpush1.msra.mxu0 0.0
      %373 = vmatprep.subr.mxu0 0.0
      %374 = vmatpush1.msra.mxu0 0.0
      %375 = vmatprep.subr.mxu0 0.0
      %376 = vmatpush1.msra.mxu0 0.0
      %377 = vmatprep.subr.mxu0 0.0
      %378 = vmatpush1.msra.mxu0 0.0
      %379 = vmatprep.subr.mxu0 0.0
      %380 = vmatpush1.msra.mxu0 0.0
      %381 = vmatprep.subr.mxu0 0.0
      %382 = vmatpush1.msra.mxu0 0.0
      %383 = vmatprep.subr.mxu0 0.0
      %384 = vmatpush1.msra.mxu0 0.0
      %385 = vmatprep.subr.mxu0 0.0
      %386 = vmatpush1.msra.mxu0 0.0
      %387 = vmatprep.subr.mxu0 0.0
      %388 = vmatpush1.msra.mxu0 0.0
      %389 = vmatprep.subr.mxu0 %v357
      %390 = vmatpush1.msra.mxu0 %v355
      %391 = vmatprep.subr.mxu0 0.0
      %392 = vmatpush2.msra.mxu0 0.0
      %393 = vmatprep.subr.mxu0 0.0
      %394 = vmatpush2.msra.mxu0 0.0
      %395 = vmatprep.subr.mxu0 0.0
      %396 = vmatpush2.msra.mxu0 0.0
      %397 = vmatprep.subr.mxu0 0.0
      %398 = vmatpush2.msra.mxu0 0.0
      %399 = vmatprep.subr.mxu0 0.0
      %400 = vmatpush2.msra.mxu0 0.0
      %401 = vmatprep.subr.mxu0 0.0
      %402 = vmatpush2.msra.mxu0 0.0
      %403 = vmatprep.subr.mxu0 0.0
      %404 = vmatpush2.msra.mxu0 0.0
      %405 = vmatprep.subr.mxu0 0.0
      %406 = vmatpush2.msra.mxu0 0.0
      %407 = vmatprep.subr.mxu0 0.0
      %408 = vmatpush2.msra.mxu0 0.0
      %409 = vmatprep.subr.mxu0 0.0
      %410 = vmatpush2.msra.mxu0 0.0
      %411 = vmatprep.subr.mxu0 0.0
      %412 = vmatpush2.msra.mxu0 0.0
      %413 = vmatprep.subr.mxu0 0.0
      %414 = vmatpush2.msra.mxu0 0.0
      %415 = vmatprep.subr.mxu0 0.0
      %416 = vmatpush2.msra.mxu0 0.0
      %417 = vmatprep.subr.mxu0 0.0
      %418 = vmatpush2.msra.mxu0 0.0
      %419 = vmatprep.subr.mxu0 0.0
      %420 = vmatpush2.msra.mxu0 0.0
      %421 = vmatprep.subr.mxu0 0.0
      %422 = vmatpush2.msra.mxu0 0.0
      %423 = vmatprep.mubr.f32.mxu0 0.0
      %424 = vmatmul.mubr.f32.gmra.mxu0 %v352
      %v425 = vpop.f32.mrf.mxu0
      %v426 = vadd.f32 %v346, %v425
      %v427 = vpop.f32.mrf.mxu0
      %v428 = vadd.f32 %v346, %v427
      %429 = vdwg.mxu0
      %v430 = vmax.f32 %v426, 0.0
      %v431 = vmax.f32 %v428, 0.0
      %v432 = vld [vmem:[%s5] sm:$0xff]
      %v433 = vld [vmem:[%s5 + $0x8] sm:$0xff]
      %v434 = vld [vmem:[%s5 + $0x10] sm:$0xff]
      %v435 = vld [vmem:[%s5 + $0x18] sm:$0xff]
      %v436 = vpack.c.bf16 %v433, %v432
      %v437 = vpack.c.bf16 %v435, %v434
      %v438 = vpack.c.bf16 %v430, %v430
      %v439 = vpack.c.bf16 %v431, %v431
      %v440 = vld [vmem:[%s6] sm:$0xff]
      %v441 = vld [vmem:[%s6 + $0x8] sm:$0xff]
      %v442 = vld [vmem:[%s6 + $0x10] sm:$0xff]
      %v443 = vld [vmem:[%s6 + $0x18] sm:$0xff]
      %445 = vset.pattern.permute.xlu0 0
      %446 = vperm.xlu0 %445, %v440
      %v447 = vpop.permute.xlu0 %446
      %450 = vset.pattern.permute.xlu0 0
      %451 = vperm.xlu0 %450, %v441
      %v452 = vpop.permute.xlu0 %451
      %455 = vset.pattern.permute.xlu0 0
      %456 = vperm.xlu0 %455, %v442
      %v457 = vpop.permute.xlu0 %456
      %460 = vset.pattern.permute.xlu0 0
      %461 = vperm.xlu0 %460, %v443
      %v462 = vpop.permute.xlu0 %461
      %vm464 = vcmask 64512
      %v466 = vsel %vm464, %v436, 0
      %v469 = vsel %vm464, %v437, 0
      %vm471 = vcmask 1043456
      %v473 = vsel %vm471, %v438, 0
      %v476 = vsel %vm471, %v439, 0
      %478 = vmatprep.subr.bf16.mxu0 0
      %479 = vmatpush1.bf16.msra.mxu0 0
      %480 = vmatprep.subr.bf16.mxu0 0
      %481 = vmatpush1.bf16.msra.mxu0 0
      %482 = vmatprep.subr.bf16.mxu0 0
      %483 = vmatpush1.bf16.msra.mxu0 0
      %484 = vmatprep.subr.bf16.mxu0 0
      %485 = vmatpush1.bf16.msra.mxu0 0
      %486 = vmatprep.subr.bf16.mxu0 0
      %487 = vmatpush1.bf16.msra.mxu0 0
      %488 = vmatprep.subr.bf16.mxu0 0
      %489 = vmatpush1.bf16.msra.mxu0 0
      %490 = vmatprep.subr.bf16.mxu0 0
      %491 = vmatpush1.bf16.msra.mxu0 0
      %492 = vmatprep.subr.bf16.mxu0 %v476
      %493 = vmatpush1.bf16.msra.mxu0 %v473
      %494 = vmatprep.subr.bf16.mxu0 0
      %495 = vmatpush2.bf16.msra.mxu0 0
      %496 = vmatprep.subr.bf16.mxu0 0
      %497 = vmatpush2.bf16.msra.mxu0 0
      %498 = vmatprep.subr.bf16.mxu0 0
      %499 = vmatpush2.bf16.msra.mxu0 0
      %500 = vmatprep.subr.bf16.mxu0 0
      %501 = vmatpush2.bf16.msra.mxu0 0
      %502 = vmatprep.subr.bf16.mxu0 0
      %503 = vmatpush2.bf16.msra.mxu0 0
      %504 = vmatprep.subr.bf16.mxu0 0
      %505 = vmatpush2.bf16.msra.mxu0 0
      %506 = vmatprep.subr.bf16.mxu0 0
      %507 = vmatpush2.bf16.msra.mxu0 0
      %508 = vmatprep.subr.bf16.mxu0 0
      %509 = vmatpush2.bf16.msra.mxu0 0
      %510 = vmatprep.mubr.bf16.mxu0 0
      %511 = vmatmul.mubr.bf16.gmra.mxu0 %v466
      %v512 = vpop.f32.mrf.mxu0
      %v513 = vadd.f32 %v447, %v512
      %v514 = vpop.f32.mrf.mxu0
      %v515 = vadd.f32 %v447, %v514
      %v516 = vpop.f32.mrf.mxu0
      %v517 = vadd.f32 %v452, %v516
      %v518 = vpop.f32.mrf.mxu0
      %v519 = vadd.f32 %v452, %v518
      %520 = vmatprep.mubr.bf16.mxu0 0
      %521 = vmatmul.mubr.bf16.gmra.mxu0 %v469
      %v522 = vpop.f32.mrf.mxu0
      %v523 = vadd.f32 %v457, %v522
      %v524 = vpop.f32.mrf.mxu0
      %v525 = vadd.f32 %v457, %v524
      %v526 = vpop.f32.mrf.mxu0
      %v527 = vadd.f32 %v462, %v526
      %v528 = vpop.f32.mrf.mxu0
      %v529 = vadd.f32 %v462, %v528
      %530 = vdwg.mxu0
      %v531 = vld [vmem:[%s328] sm:$0xff]
      %v532 = vld [vmem:[%s328 + $0x8] sm:$0xff]
      %v533 = vld [vmem:[%s328 + $0x10] sm:$0xff]
      %v534 = vld [vmem:[%s328 + $0x18] sm:$0xff]
      %v535 = vld [vmem:[%s328 + $0x20] sm:$0xff]
      %v536 = vld [vmem:[%s328 + $0x28] sm:$0xff]
      %v537 = vld [vmem:[%s328 + $0x30] sm:$0xff]
      %v538 = vld [vmem:[%s328 + $0x38] sm:$0xff]
      %v539 = vadd.f32 %v513, %v531
      %v540 = vadd.f32 %v515, %v532
      %v541 = vadd.f32 %v517, %v533
      %v542 = vadd.f32 %v519, %v534
      %v543 = vadd.f32 %v523, %v535
      %v544 = vadd.f32 %v525, %v536
      %v545 = vadd.f32 %v527, %v537
      %v546 = vadd.f32 %v529, %v538
      %v547 = vadd.f32 %v539, %v540
      %548 = vadd.xlane.f32.xlu0 %v547
      %v549 = vpop.xlane.xlu0 %548
      %v550 = vadd.f32 %v541, %v542
      %551 = vadd.xlane.f32.xlu0 %v550
      %v552 = vpop.xlane.xlu0 %551
      %v553 = vadd.f32 %v543, %v544
      %554 = vadd.xlane.f32.xlu0 %v553
      %v555 = vpop.xlane.xlu0 %554
      %v556 = vadd.f32 %v545, %v546
      %557 = vadd.xlane.f32.xlu0 %v556
      %v558 = vpop.xlane.xlu0 %557
      %v559 = vmul.f32 %v549, 0.00390625
      %v560 = vmul.f32 %v552, 0.00390625
      %v561 = vmul.f32 %v555, 0.00390625
      %v562 = vmul.f32 %v558, 0.00390625
      %vm563 = vcmask 7168
      %564 = vst.msk [vmem:[%s333] sm:$0xff] %vm563, %v559
      %565 = vst.msk [vmem:[%s333 + $0x8] sm:$0xff] %vm563, %v560
      %566 = vst.msk [vmem:[%s333 + $0x10] sm:$0xff] %vm563, %v561
      %567 = vst.msk [vmem:[%s333 + $0x18] sm:$0xff] %vm563, %v562
      %v568 = vld [vmem:[%s2] sm:$0xff]
      %v569 = vld [vmem:[%s2 + $0x8] sm:$0xff]
      %v570 = vpack.c.bf16 %v569, %v568
      %v571 = vpack.c.bf16 %v541, %v539
      %v572 = vpack.c.bf16 %v542, %v540
      %v573 = vpack.c.bf16 %v545, %v543
      %v574 = vpack.c.bf16 %v546, %v544
      %vm575 = vcmask 261120
      %v577 = vsel %vm575, %v570, 0
      %579 = vmatprep.subr.bf16.mxu0 0
      %580 = vmatpush1.bf16.msra.mxu0 0
      %581 = vmatprep.subr.bf16.mxu0 0
      %582 = vmatpush1.bf16.msra.mxu0 0
      %583 = vmatprep.subr.bf16.mxu0 0
      %584 = vmatpush1.bf16.msra.mxu0 0
      %585 = vmatprep.subr.bf16.mxu0 0
      %586 = vmatpush1.bf16.msra.mxu0 0
      %587 = vmatprep.subr.bf16.mxu0 0
      %588 = vmatpush1.bf16.msra.mxu0 0
      %589 = vmatprep.subr.bf16.mxu0 0
      %590 = vmatpush1.bf16.msra.mxu0 0
      %591 = vmatprep.subr.bf16.mxu0 %v574
      %592 = vmatpush1.bf16.msra.mxu0 %v573
      %593 = vmatprep.subr.bf16.mxu0 %v572
      %594 = vmatpush1.bf16.msra.mxu0 %v571
      %595 = vmatprep.subr.bf16.mxu0 0
      %596 = vmatpush2.bf16.msra.mxu0 0
      %597 = vmatprep.subr.bf16.mxu0 0
      %598 = vmatpush2.bf16.msra.mxu0 0
      %599 = vmatprep.subr.bf16.mxu0 0
      %600 = vmatpush2.bf16.msra.mxu0 0
      %601 = vmatprep.subr.bf16.mxu0 0
      %602 = vmatpush2.bf16.msra.mxu0 0
      %603 = vmatprep.subr.bf16.mxu0 0
      %604 = vmatpush2.bf16.msra.mxu0 0
      %605 = vmatprep.subr.bf16.mxu0 0
      %606 = vmatpush2.bf16.msra.mxu0 0
      %607 = vmatprep.subr.bf16.mxu0 0
      %608 = vmatpush2.bf16.msra.mxu0 0
      %609 = vmatprep.subr.bf16.mxu0 0
      %610 = vmatpush2.bf16.msra.mxu0 0
      %611 = vmatprep.mubr.bf16.mxu0 0
      %612 = vmatmul.mubr.bf16.gmra.mxu0 %v577
      %v613 = vpop.f32.mrf.mxu0
      %v614 = vadd.f32 0.0, %v613
      %v615 = vpop.f32.mrf.mxu0
      %v616 = vadd.f32 0.0, %v615
      %v617 = vpop.f32.mrf.mxu0
      %v618 = vadd.f32 0.0, %v617
      %v619 = vpop.f32.mrf.mxu0
      %v620 = vadd.f32 0.0, %v619
      %621 = vdwg.mxu0
      %v622 = vmul.f32 %v614, 0.17677669
      %v623 = vmul.f32 %v616, 0.17677669
      %v624 = vmul.f32 %v618, 0.17677669
      %v625 = vmul.f32 %v620, 0.17677669
      %v626 = vxor.u32 %v622, 2147483648
      %v627 = vxor.u32 %v623, 2147483648
      %v628 = vxor.u32 %v624, 2147483648
      %v629 = vxor.u32 %v625, 2147483648
      %v630 = vmul.f32 %v626, 1.442695
      %v631 = vpow.pop %v630
      %v632 = vmul.f32 %v627, 1.442695
      %v633 = vpow.pop %v632
      %v634 = vmul.f32 %v628, 1.442695
      %v635 = vpow.pop %v634
      %v636 = vmul.f32 %v629, 1.442695
      %v637 = vpow.pop %v636
      %v638 = vadd.f32 %v631, 1.0
      %v639 = vadd.f32 %v633, 1.0
      %v640 = vadd.f32 %v635, 1.0
      %v641 = vadd.f32 %v637, 1.0
      %v642 = vrcp.pop %v638
      %v643 = vmul.f32 1.0, %v642
      %v644 = vrcp.pop %v639
      %v645 = vmul.f32 1.0, %v644
      %v646 = vrcp.pop %v640
      %v647 = vmul.f32 1.0, %v646
      %v648 = vrcp.pop %v641
      %v649 = vmul.f32 1.0, %v648
      %650 = vst [vmem:[%s338] sm:$0xff] %v643
      %651 = vst [vmem:[%s338 + $0x8] sm:$0xff] %v645
      %652 = vst [vmem:[%s338 + $0x10] sm:$0xff] %v647
      %653 = vst [vmem:[%s338 + $0x18] sm:$0xff] %v649
      %p654 = scmp.lt.s32.totalorder %s20, 1
      %s655 = scalar_select %p654, %s20, 1
      %s656 = smul.addr %s655, 4
      %s657 = smul.addr %s656, 8
      %s658 = scalar_lea.vmem %s7, %s657
      %p659 = scmp.lt.s32.totalorder %s20, 1
      %s660 = scalar_select %p659, %s20, 1
      %s661 = smul.addr %s660, 4
      %s662 = smul.addr %s661, 8
      %s663 = scalar_lea.vmem %s8, %s662
      // Predicated region
      $region49: #{reltr_forward.3} parent=47 // pred_check
        %p664 = pneg %p195
      $region50: #{reltr_forward.3} parent=47 // pred_check_branch
        %666 = sbr.rel (%p664) target = $region52
      $region51: #{reltr_forward.3} parent=47 // pred_region
        _
      $region52: #{reltr_forward.3} parent=47 // pred_fallthru
        _
      // Predicated region
      $region53: #{reltr_forward.3} parent=47 // pred_check
        %p667 = pneg %p221
      $region54: #{reltr_forward.3} parent=47 // pred_check_branch
        %669 = sbr.rel (%p667) target = $region56
      $region55: #{reltr_forward.3} parent=47 // pred_region
        _
      $region56: #{reltr_forward.3} parent=47 // pred_fallthru
        _
    $region48: #{reltr_forward.3} parent=5 // pred_fallthru
      _
    %p670 = scmp.le.s32.totalorder 2, %s15
    // Predicated region
    $region57: #{reltr_forward.3} parent=5 // pred_check
      %p671 = pneg %p670
    $region58: #{reltr_forward.3} parent=5 // pred_check_branch
      %673 = sbr.rel (%p671) target = $region60
    $region59: #{reltr_forward.3} parent=5 // pred_region
      %s674 = ssub.s32 %s15, 2
      // Predicated region
      $region61: #{reltr_forward.3} parent=59 // pred_check
        %p675 = pneg %p201
      $region62: #{reltr_forward.3} parent=59 // pred_check_branch
        %677 = sbr.rel (%p675) target = $region64
      $region63: #{reltr_forward.3} parent=59 // pred_region
        %p678 = scmp.lt.s32.totalorder %s21, 1
        %s679 = scalar_select %p678, %s21, 1
        %s680 = smul.addr %s679, 4
        %s681 = smul.addr %s680, 8
        %s682 = scalar_lea.vmem %s7, %s681
      $region64: #{reltr_forward.3} parent=59 // pred_fallthru
        _
      // Predicated region
      $region65: #{reltr_forward.3} parent=59 // pred_check
        %p683 = pneg %p227
      $region66: #{reltr_forward.3} parent=59 // pred_check_branch
        %685 = sbr.rel (%p683) target = $region68
      $region67: #{reltr_forward.3} parent=59 // pred_region
        %p686 = scmp.lt.s32.totalorder %s21, 1
        %s687 = scalar_select %p686, %s21, 1
        %s688 = smul.addr %s687, 4
        %s689 = smul.addr %s688, 8
        %s690 = scalar_lea.vmem %s8, %s689
      $region68: #{reltr_forward.3} parent=59 // pred_fallthru
        _
    $region60: #{reltr_forward.3} parent=5 // pred_fallthru
      _
  $region6: #{reltr_forward.3} parent=0 // loop_footer
    %s19 = sadd.s32 1, %s15
  $region7: #{reltr_forward.3} parent=0 // loop_footer_branch
    %14 = sbr.rel target = $region3
  $region8: #{reltr_forward.3} parent=0 // loop_exit
    _

// kernel: reltr_forward.5
$region0: #{reltr_forward.5}
  #allocation0 [shape = 'u32[]', space=smem, size = 0x4, offset = 0x4, fixed_abs, tag = 'smem constant byte address 0x4 - core index']
  #allocation1 [shape = 'u32[144,128]{1,0:T(1,128)}', space=vmem, size = 0x12000, scoped, tag = 'internal scratch']
  %s0 = inlined_call_operand.vmem [shape: f32[3,16,32], index: 0, kind: input, shape index: {}]
  %s1 = inlined_call_operand.vmem [shape: f32[3,32,64], index: 1, kind: input, shape index: {}]
  %s2 = inlined_call_operand.vmem [shape: f32[3,1,64], index: 2, kind: input, shape index: {}]
  %s3 = inlined_call_operand.vmem [shape: f32[3,32,32], index: 3, kind: input, shape index: {}]
  %s4 = inlined_call_operand.vmem [shape: f32[3,1,32], index: 4, kind: input, shape index: {}]
  %s5 = inlined_call_operand.vmem [shape: f32[3,32,32], index: 5, kind: input, shape index: {}]
  %s6 = inlined_call_operand.vmem [shape: f32[3,1,32], index: 6, kind: input, shape index: {}]
  %s7 = inlined_call_operand.vmem [shape: f32[3,32,64], index: 7, kind: input, shape index: {}]
  %s8 = inlined_call_operand.vmem [shape: f32[3,1,64], index: 8, kind: input, shape index: {}]
  %s9 = inlined_call_operand.vmem [shape: f32[3,16,128], index: 9, kind: output, shape index: {}]
  %s10 = sld [smem:[#allocation0]]
  $region69: #{reltr_forward.5} parent=0
    _
  %s12 = ssub.s32 1, %s10
  %s13 = scalar_select 0, %s12, %s10
  loop: start=0, step=1, limit=5
  $region2: #{reltr_forward.5} parent=0 // loop_pre_header
    _
  $region3: #{reltr_forward.5} parent=0 // loop_header
    %s15 = sphi 0, %s19
    %p16 = scmp.ge.s32.totalorder %s15, 5
    %s25 = sphi 0, %s27
    %s28 = sphi 0, %s25
    %s29 = sphi 0, %s28
    %s45 = sphi 0, %s29
    %s51 = sphi 0, %s53
    %s54 = sphi 0, %s51
    %s55 = sphi 0, %s54
    %s71 = sphi 0, %s55
    %s77 = sphi 0, %s79
    %s80 = sphi 0, %s77
    %s81 = sphi 0, %s80
    %s97 = sphi 0, %s81
    %s103 = sphi 0, %s105
    %s106 = sphi 0, %s103
    %s107 = sphi 0, %s106
    %s123 = sphi 0, %s107
    %s129 = sphi 0, %s131
    %s132 = sphi 0, %s129
    %s133 = sphi 0, %s132
    %s149 = sphi 0, %s133
    %s155 = sphi 0, %s157
    %s158 = sphi 0, %s155
    %s159 = sphi 0, %s158
    %s175 = sphi 0, %s159
    %s181 = sphi 0, %s183
    %s184 = sphi 0, %s181
    %s185 = sphi 0, %s184
    %s201 = sphi 0, %s185
    %s207 = sphi 0, %s209
    %s210 = sphi 0, %s207
    %s211 = sphi 0, %s210
    %s227 = sphi 0, %s211
    %s233 = sphi 0, %s235
    %s236 = sphi 0, %s233
    %s237 = sphi 0, %s236
    %s253 = sphi 0, %s237
    %s259 = sphi 0, %s261
    %s262 = sphi 0, %s259
    %s263 = sphi 0, %s262
    %s279 = sphi 0, %s263
  $region4: #{reltr_forward.5} parent=0 // loop_header_branch
    %18 = sbr.rel (%p16) target = $region8
  $region5: #{reltr_forward.5} parent=0 // loop_body
    %s20 = ssub.s32 %s15, 1
    %s21 = ssub.s32 %s15, 2
    %s22 = sadd.s32 %s15, 1
    %s23 = ssub.s32 %s15, %s22
    %p24 = scmp.eq.s32.totalorder %s23, 0
    %s26 = sadd.s32 %s25, 1
    %s27 = scalar_select %p24, %s25, %s26
    %p30 = pneg %p24
    %p31 = scmp.eq.s32.totalorder %s15, 2
    %p32 = por %p30, %p31
    %p33 = scmp.ne.s32.totalorder %s25, %s28
    %p34 = scmp.eq.s32.totalorder %s15, 0
    %p35 = por %p33, %p34
    %p36 = scmp.ne.s32.totalorder %s25, %s28
    %p37 = scmp.eq.s32.totalorder %s20, 2
    %p38 = por %p36, %p37
    %p39 = scmp.ne.s32.totalorder %s28, %s29
    %p40 = scmp.eq.s32.totalorder %s20, 0
    %p41 = por %p39, %p40
    %p42 = scmp.ne.s32.totalorder %s28, %s29
    %p43 = scmp.eq.s32.totalorder %s21, 2
    %p44 = por %p42, %p43
    %p46 = scmp.ne.s32.totalorder %s29, %s45
    %p47 = scmp.eq.s32.totalorder %s21, 0
    %p48 = por %p46, %p47
    %s49 = ssub.s32 %s15, %s22
    %p50 = scmp.eq.s32.totalorder %s49, 0
    %s52 = sadd.s32 %s51, 1
    %s53 = scalar_select %p50, %s51, %s52
    %p56 = pneg %p50
    %p57 = scmp.eq.s32.totalorder %s15, 2
    %p58 = por %p56, %p57
    %p59 = scmp.ne.s32.totalorder %s51, %s54
    %p60 = scmp.eq.s32.totalorder %s15, 0
    %p61 = por %p59, %p60
    %p62 = scmp.ne.s32.totalorder %s51, %s54
    %p63 = scmp.eq.s32.totalorder %s20, 2
    %p64 = por %p62, %p63
    %p65 = scmp.ne.s32.totalorder %s54, %s55
    %p66 = scmp.eq.s32.totalorder %s20, 0
    %p67 = por %p65, %p66
    %p68 = scmp.ne.s32.totalorder %s54, %s55
    %p69 = scmp.eq.s32.totalorder %s21, 2
    %p70 = por %p68, %p69
    %p72 = scmp.ne.s32.totalorder %s55, %s71
    %p73 = scmp.eq.s32.totalorder %s21, 0
    %p74 = por %p72, %p73
    %s75 = ssub.s32 %s15, %s22
    %p76 = scmp.eq.s32.totalorder %s75, 0
    %s78 = sadd.s32 %s77, 1
    %s79 = scalar_select %p76, %s77, %s78
    %p82 = pneg %p76
    %p83 = scmp.eq.s32.totalorder %s15, 2
    %p84 = por %p82, %p83
    %p85 = scmp.ne.s32.totalorder %s77, %s80
    %p86 = scmp.eq.s32.totalorder %s15, 0
    %p87 = por %p85, %p86
    %p88 = scmp.ne.s32.totalorder %s77, %s80
    %p89 = scmp.eq.s32.totalorder %s20, 2
    %p90 = por %p88, %p89
    %p91 = scmp.ne.s32.totalorder %s80, %s81
    %p92 = scmp.eq.s32.totalorder %s20, 0
    %p93 = por %p91, %p92
    %p94 = scmp.ne.s32.totalorder %s80, %s81
    %p95 = scmp.eq.s32.totalorder %s21, 2
    %p96 = por %p94, %p95
    %p98 = scmp.ne.s32.totalorder %s81, %s97
    %p99 = scmp.eq.s32.totalorder %s21, 0
    %p100 = por %p98, %p99
    %s101 = ssub.s32 %s15, %s22
    %p102 = scmp.eq.s32.totalorder %s101, 0
    %s104 = sadd.s32 %s103, 1
    %s105 = scalar_select %p102, %s103, %s104
    %p108 = pneg %p102
    %p109 = scmp.eq.s32.totalorder %s15, 2
    %p110 = por %p108, %p109
    %p111 = scmp.ne.s32.totalorder %s103, %s106
    %p112 = scmp.eq.s32.totalorder %s15, 0
    %p113 = por %p111, %p112
    %p114 = scmp.ne.s32.totalorder %s103, %s106
    %p115 = scmp.eq.s32.totalorder %s20, 2
    %p116 = por %p114, %p115
    %p117 = scmp.ne.s32.totalorder %s106, %s107
    %p118 = scmp.eq.s32.totalorder %s20, 0
    %p119 = por %p117, %p118
    %p120 = scmp.ne.s32.totalorder %s106, %s107
    %p121 = scmp.eq.s32.totalorder %s21, 2
    %p122 = por %p120, %p121
    %p124 = scmp.ne.s32.totalorder %s107, %s123
    %p125 = scmp.eq.s32.totalorder %s21, 0
    %p126 = por %p124, %p125
    %s127 = ssub.s32 %s15, %s22
    %p128 = scmp.eq.s32.totalorder %s127, 0
    %s130 = sadd.s32 %s129, 1
    %s131 = scalar_select %p128, %s129, %s130
    %p134 = pneg %p128
    %p135 = scmp.eq.s32.totalorder %s15, 2
    %p136 = por %p134, %p135
    %p137 = scmp.ne.s32.totalorder %s129, %s132
    %p138 = scmp.eq.s32.totalorder %s15, 0
    %p139 = por %p137, %p138
    %p140 = scmp.ne.s32.totalorder %s129, %s132
    %p141 = scmp.eq.s32.totalorder %s20, 2
    %p142 = por %p140, %p141
    %p143 = scmp.ne.s32.totalorder %s132, %s133
    %p144 = scmp.eq.s32.totalorder %s20, 0
    %p145 = por %p143, %p144
    %p146 = scmp.ne.s32.totalorder %s132, %s133
    %p147 = scmp.eq.s32.totalorder %s21, 2
    %p148 = por %p146, %p147
    %p150 = scmp.ne.s32.totalorder %s133, %s149
    %p151 = scmp.eq.s32.totalorder %s21, 0
    %p152 = por %p150, %p151
    %s153 = ssub.s32 %s15, %s22
    %p154 = scmp.eq.s32.totalorder %s153, 0
    %s156 = sadd.s32 %s155, 1
    %s157 = scalar_select %p154, %s155, %s156
    %p160 = pneg %p154
    %p161 = scmp.eq.s32.totalorder %s15, 2
    %p162 = por %p160, %p161
    %p163 = scmp.ne.s32.totalorder %s155, %s158
    %p164 = scmp.eq.s32.totalorder %s15, 0
    %p165 = por %p163, %p164
    %p166 = scmp.ne.s32.totalorder %s155, %s158
    %p167 = scmp.eq.s32.totalorder %s20, 2
    %p168 = por %p166, %p167
    %p169 = scmp.ne.s32.totalorder %s158, %s159
    %p170 = scmp.eq.s32.totalorder %s20, 0
    %p171 = por %p169, %p170
    %p172 = scmp.ne.s32.totalorder %s158, %s159
    %p173 = scmp.eq.s32.totalorder %s21, 2
    %p174 = por %p172, %p173
    %p176 = scmp.ne.s32.totalorder %s159, %s175
    %p177 = scmp.eq.s32.totalorder %s21, 0
    %p178 = por %p176, %p177
    %s179 = ssub.s32 %s15, %s22
    %p180 = scmp.eq.s32.totalorder %s179, 0
    %s182 = sadd.s32 %s181, 1
    %s183 = scalar_select %p180, %s181, %s182
    %p186 = pneg %p180
    %p187 = scmp.eq.s32.totalorder %s15, 2
    %p188 = por %p186, %p187
    %p189 = scmp.ne.s32.totalorder %s181, %s184
    %p190 = scmp.eq.s32.totalorder %s15, 0
    %p191 = por %p189, %p190
    %p192 = scmp.ne.s32.totalorder %s181, %s184
    %p193 = scmp.eq.s32.totalorder %s20, 2
    %p194 = por %p192, %p193
    %p195 = scmp.ne.s32.totalorder %s184, %s185
    %p196 = scmp.eq.s32.totalorder %s20, 0
    %p197 = por %p195, %p196
    %p198 = scmp.ne.s32.totalorder %s184, %s185
    %p199 = scmp.eq.s32.totalorder %s21, 2
    %p200 = por %p198, %p199
    %p202 = scmp.ne.s32.totalorder %s185, %s201
    %p203 = scmp.eq.s32.totalorder %s21, 0
    %p204 = por %p202, %p203
    %s205 = ssub.s32 %s15, %s22
    %p206 = scmp.eq.s32.totalorder %s205, 0
    %s208 = sadd.s32 %s207, 1
    %s209 = scalar_select %p206, %s207, %s208
    %p212 = pneg %p206
    %p213 = scmp.eq.s32.totalorder %s15, 2
    %p214 = por %p212, %p213
    %p215 = scmp.ne.s32.totalorder %s207, %s210
    %p216 = scmp.eq.s32.totalorder %s15, 0
    %p217 = por %p215, %p216
    %p218 = scmp.ne.s32.totalorder %s207, %s210
    %p219 = scmp.eq.s32.totalorder %s20, 2
    %p220 = por %p218, %p219
    %p221 = scmp.ne.s32.totalorder %s210, %s211
    %p222 = scmp.eq.s32.totalorder %s20, 0
    %p223 = por %p221, %p222
    %p224 = scmp.ne.s32.totalorder %s210, %s211
    %p225 = scmp.eq.s32.totalorder %s21, 2
    %p226 = por %p224, %p225
    %p228 = scmp.ne.s32.totalorder %s211, %s227
    %p229 = scmp.eq.s32.totalorder %s21, 0
    %p230 = por %p228, %p229
    %s231 = ssub.s32 %s15, %s22
    %p232 = scmp.eq.s32.totalorder %s231, 0
    %s234 = sadd.s32 %s233, 1
    %s235 = scalar_select %p232, %s233, %s234
    %p238 = pneg %p232
    %p239 = scmp.eq.s32.totalorder %s15, 2
    %p240 = por %p238, %p239
    %p241 = scmp.ne.s32.totalorder %s233, %s236
    %p242 = scmp.eq.s32.totalorder %s15, 0
    %p243 = por %p241, %p242
    %p244 = scmp.ne.s32.totalorder %s233, %s236
    %p245 = scmp.eq.s32.totalorder %s20, 2
    %p246 = por %p244, %p245
    %p247 = scmp.ne.s32.totalorder %s236, %s237
    %p248 = scmp.eq.s32.totalorder %s20, 0
    %p249 = por %p247, %p248
    %p250 = scmp.ne.s32.totalorder %s236, %s237
    %p251 = scmp.eq.s32.totalorder %s21, 2
    %p252 = por %p250, %p251
    %p254 = scmp.ne.s32.totalorder %s237, %s253
    %p255 = scmp.eq.s32.totalorder %s21, 0
    %p256 = por %p254, %p255
    %s257 = ssub.s32 %s15, %s22
    %p258 = scmp.eq.s32.totalorder %s257, 0
    %s260 = sadd.s32 %s259, 1
    %s261 = scalar_select %p258, %s259, %s260
    %p264 = pneg %p258
    %p265 = scmp.eq.s32.totalorder %s15, 2
    %p266 = por %p264, %p265
    %p267 = scmp.ne.s32.totalorder %s259, %s262
    %p268 = scmp.eq.s32.totalorder %s15, 0
    %p269 = por %p267, %p268
    %p270 = scmp.ne.s32.totalorder %s259, %s262
    %p271 = scmp.eq.s32.totalorder %s20, 2
    %p272 = por %p270, %p271
    %p273 = scmp.ne.s32.totalorder %s262, %s263
    %p274 = scmp.eq.s32.totalorder %s20, 0
    %p275 = por %p273, %p274
    %p276 = scmp.ne.s32.totalorder %s262, %s263
    %p277 = scmp.eq.s32.totalorder %s21, 2
    %p278 = por %p276, %p277
    %p280 = scmp.ne.s32.totalorder %s263, %s279
    %p281 = scmp.eq.s32.totalorder %s21, 0
    %p282 = por %p280, %p281
    %p283 = scmp.le.s32.totalorder 1, %s15
    %p284 = scmp.lt.s32.totalorder %s15, 4
    %p285 = pnand %p283, %p284
    %p286 = pneg %p285
    // Predicated region
    $region9: #{reltr_forward.5} parent=5 // pred_check
      _
    $region10: #{reltr_forward.5} parent=5 // pred_check_branch
      %288 = sbr.rel (%p285) target = $region12
    $region11: #{reltr_forward.5} parent=5 // pred_region
      %s289 = ssub.s32 %s15, 1
    $region12: #{reltr_forward.5} parent=5 // pred_fallthru
      _
    %p290 = scmp.lt.s32.totalorder %s15, 3
    // Predicated region
    $region13: #{reltr_forward.5} parent=5 // pred_check
      %p291 = pneg %p290
    $region14: #{reltr_forward.5} parent=5 // pred_check_branch
      %293 = sbr.rel (%p291) target = $region16
    $region15: #{reltr_forward.5} parent=5 // pred_region
      // Predicated region
      $region17: #{reltr_forward.5} parent=15 // pred_check
        %p294 = pneg %p35
      $region18: #{reltr_forward.5} parent=15 // pred_check_branch
        %296 = sbr.rel (%p294) target = $region20
      $region19: #{reltr_forward.5} parent=15 // pred_region
        %p297 = scmp.lt.s32.totalorder %s15, 2
        %s298 = scalar_select %p297, %s15, 2
        %s299 = smul.addr %s298, 2
        %s300 = smul.addr %s299, 8
        %s301 = scalar_lea.vmem %s0, %s300
      $region20: #{reltr_forward.5} parent=15 // pred_fallthru
        _
      // Predicated region
      $region21: #{reltr_forward.5} parent=15 // pred_check
        %p302 = pneg %p61
      $region22: #{reltr_forward.5} parent=15 // pred_check_branch
        %304 = sbr.rel (%p302) target = $region24
      $region23: #{reltr_forward.5} parent=15 // pred_region
        %p305 = scmp.lt.s32.totalorder %s15, 2
        %s306 = scalar_select %p305, %s15, 2
        %s307 = smul.addr %s306, 4
        %s308 = smul.addr %s307, 8
        %s309 = scalar_lea.vmem %s1, %s308
      $region24: #{reltr_forward.5} parent=15 // pred_fallthru
        _
      // Predicated region
      $region25: #{reltr_forward.5} parent=15 // pred_check
        %p310 = pneg %p87
      $region26: #{reltr_forward.5} parent=15 // pred_check_branch
        %312 = sbr.rel (%p310) target = $region28
      $region27: #{reltr_forward.5} parent=15 // pred_region
        %p313 = scmp.lt.s32.totalorder %s15, 2
        %s314 = scalar_select %p313, %s15, 2
        %s315 = scalar_lea.vmem %s2, %s314
      $region28: #{reltr_forward.5} parent=15 // pred_fallthru
        _
      // Predicated region
      $region29: #{reltr_forward.5} parent=15 // pred_check
        %p316 = pneg %p113
      $region30: #{reltr_forward.5} parent=15 // pred_check_branch
        %318 = sbr.rel (%p316) target = $region32
      $region31: #{reltr_forward.5} parent=15 // pred_region
        %p319 = scmp.lt.s32.totalorder %s15, 2
        %s320 = scalar_select %p319, %s15, 2
        %s321 = smul.addr %s320, 4
        %s322 = smul.addr %s321, 8
        %s323 = scalar_lea.vmem %s3, %s322
      $region32: #{reltr_forward.5} parent=15 // pred_fallthru
        _
      // Predicated region
      $region33: #{reltr_forward.5} parent=15 // pred_check
        %p324 = pneg %p139
      $region34: #{reltr_forward.5} parent=15 // pred_check_branch
        %326 = sbr.rel (%p324) target = $region36
      $region35: #{reltr_forward.5} parent=15 // pred_region
        %p327 = scmp.lt.s32.totalorder %s15, 2
        %s328 = scalar_select %p327, %s15, 2
        %s329 = scalar_lea.vmem %s4, %s328
      $region36: #{reltr_forward.5} parent=15 // pred_fallthru
        _
      // Predicated region
      $region37: #{reltr_forward.5} parent=15 // pred_check
        %p330 = pneg %p165
      $region38: #{reltr_forward.5} parent=15 // pred_check_branch
        %332 = sbr.rel (%p330) target = $region40
      $region39: #{reltr_forward.5} parent=15 // pred_region
        %p333 = scmp.lt.s32.totalorder %s15, 2
        %s334 = scalar_select %p333, %s15, 2
        %s335 = smul.addr %s334, 4
        %s336 = smul.addr %s335, 8
        %s337 = scalar_lea.vmem %s5, %s336
      $region40: #{reltr_forward.5} parent=15 // pred_fallthru
        _
      // Predicated region
      $region41: #{reltr_forward.5} parent=15 // pred_check
        %p338 = pneg %p191
      $region42: #{reltr_forward.5} parent=15 // pred_check_branch
        %340 = sbr.rel (%p338) target = $region44
      $region43: #{reltr_forward.5} parent=15 // pred_region
        %p341 = scmp.lt.s32.totalorder %s15, 2
        %s342 = scalar_select %p341, %s15, 2
        %s343 = scalar_lea.vmem %s6, %s342
      $region44: #{reltr_forward.5} parent=15 // pred_fallthru
        _
      // Predicated region
      $region45: #{reltr_forward.5} parent=15 // pred_check
        %p344 = pneg %p217
      $region46: #{reltr_forward.5} parent=15 // pred_check_branch
        %346 = sbr.rel (%p344) target = $region48
      $region47: #{reltr_forward.5} parent=15 // pred_region
        %p347 = scmp.lt.s32.totalorder %s15, 2
        %s348 = scalar_select %p347, %s15, 2
        %s349 = smul.addr %s348, 4
        %s350 = smul.addr %s349, 8
        %s351 = scalar_lea.vmem %s7, %s350
      $region48: #{reltr_forward.5} parent=15 // pred_fallthru
        _
      // Predicated region
      $region49: #{reltr_forward.5} parent=15 // pred_check
        %p352 = pneg %p243
      $region50: #{reltr_forward.5} parent=15 // pred_check_branch
        %354 = sbr.rel (%p352) target = $region52
      $region51: #{reltr_forward.5} parent=15 // pred_region
        %p355 = scmp.lt.s32.totalorder %s15, 2
        %s356 = scalar_select %p355, %s15, 2
        %s357 = scalar_lea.vmem %s8, %s356
      $region52: #{reltr_forward.5} parent=15 // pred_fallthru
        _
    $region16: #{reltr_forward.5} parent=5 // pred_fallthru
      _
    %p358 = scmp.le.s32.totalorder 1, %s15
    %p359 = scmp.lt.s32.totalorder %s15, 4
    %p360 = pnand %p358, %p359
    %p361 = pneg %p360
    // Predicated region
    $region53: #{reltr_forward.5} parent=5 // pred_check
      _
    $region54: #{reltr_forward.5} parent=5 // pred_check_branch
      %363 = sbr.rel (%p360) target = $region56
    $region55: #{reltr_forward.5} parent=5 // pred_region
      %s364 = ssub.s32 %s15, 1
      %p365 = scmp.lt.s32.totalorder %s20, 2
      %s366 = scalar_select %p365, %s20, 2
      %s367 = smul.addr %s366, 2
      %s368 = smul.addr %s367, 8
      %s369 = scalar_lea.vmem %s0, %s368
      %p370 = pneg %p41
      %p371 = pneg %p38
      %p372 = scmp.lt.s32.totalorder %s20, 2
      %s373 = scalar_select %p372, %s20, 2
      %s374 = smul.addr %s373, 4
      %s375 = smul.addr %s374, 8
      %s376 = scalar_lea.vmem %s1, %s375
      %p377 = pneg %p67
      %p378 = pneg %p64
      %p379 = scmp.lt.s32.totalorder %s20, 2
      %s380 = scalar_select %p379, %s20, 2
      %s381 = scalar_lea.vmem %s2, %s380
      %p382 = pneg %p93
      %p383 = pneg %p90
      %p384 = scmp.lt.s32.totalorder %s20, 2
      %s385 = scalar_select %p384, %s20, 2
      %s386 = smul.addr %s385, 4
      %s387 = smul.addr %s386, 8
      %s388 = scalar_lea.vmem %s3, %s387
      %p389 = pneg %p119
      %p390 = pneg %p116
      %p391 = scmp.lt.s32.totalorder %s20, 2
      %s392 = scalar_select %p391, %s20, 2
      %s393 = scalar_lea.vmem %s4, %s392
      %p394 = pneg %p145
      %p395 = pneg %p142
      %p396 = scmp.lt.s32.totalorder %s20, 2
      %s397 = scalar_select %p396, %s20, 2
      %s398 = smul.addr %s397, 4
      %s399 = smul.addr %s398, 8
      %s400 = scalar_lea.vmem %s5, %s399
      %p401 = pneg %p171
      %p402 = pneg %p168
      %p403 = scmp.lt.s32.totalorder %s20, 2
      %s404 = scalar_select %p403, %s20, 2
      %s405 = scalar_lea.vmem %s6, %s404
      %p406 = pneg %p197
      %p407 = pneg %p194
      %p408 = scmp.lt.s32.totalorder %s20, 2
      %s409 = scalar_select %p408, %s20, 2
      %s410 = smul.addr %s409, 4
      %s411 = smul.addr %s410, 8
      %s412 = scalar_lea.vmem %s7, %s411
      %p413 = pneg %p223
      %p414 = pneg %p220
      %p415 = scmp.lt.s32.totalorder %s20, 2
      %s416 = scalar_select %p415, %s20, 2
      %s417 = scalar_lea.vmem %s8, %s416
      %p418 = pneg %p249
      %p419 = pneg %p246
      %p420 = pneg %p275
      %p421 = pneg %p272
      %p422 = scmp.lt.s32.totalorder %s20, 2
      %s423 = scalar_select %p422, %s20, 2
      %s424 = smul.addr %s423, 2
      %s425 = smul.addr %s424, 8
      %s426 = scalar_lea.vmem %s9, %s425
      %p427 = scmp.lt.s32.totalorder %s20, 2
      %s428 = scalar_select %p427, %s20, 2
      %s429 = smul.addr %s428, 2
      %s430 = smul.addr %s429, 8
      %s431 = scalar_lea.vmem %s0, %s430
      %p432 = scmp.lt.s32.totalorder %s20, 2
      %s433 = scalar_select %p432, %s20, 2
      %s434 = smul.addr %s433, 4
      %s435 = smul.addr %s434, 8
      %s436 = scalar_lea.vmem %s1, %s435
      %p437 = scmp.lt.s32.totalorder %s20, 2
      %s438 = scalar_select %p437, %s20, 2
      %s439 = scalar_lea.vmem %s2, %s438
      %p440 = scmp.lt.s32.totalorder %s20, 2
      %s441 = scalar_select %p440, %s20, 2
      %s442 = smul.addr %s441, 4
      %s443 = smul.addr %s442, 8
      %s444 = scalar_lea.vmem %s3, %s443
      %p445 = scmp.lt.s32.totalorder %s20, 2
      %s446 = scalar_select %p445, %s20, 2
      %s447 = scalar_lea.vmem %s4, %s446
      %p448 = scmp.lt.s32.totalorder %s20, 2
      %s449 = scalar_select %p448, %s20, 2
      %s450 = smul.addr %s449, 4
      %s451 = smul.addr %s450, 8
      %s452 = scalar_lea.vmem %s5, %s451
      %p453 = scmp.lt.s32.totalorder %s20, 2
      %s454 = scalar_select %p453, %s20, 2
      %s455 = scalar_lea.vmem %s6, %s454
      %p456 = scmp.lt.s32.totalorder %s20, 2
      %s457 = scalar_select %p456, %s20, 2
      %s458 = smul.addr %s457, 4
      %s459 = smul.addr %s458, 8
      %s460 = scalar_lea.vmem %s7, %s459
      %p461 = scmp.lt.s32.totalorder %s20, 2
      %s462 = scalar_select %p461, %s20, 2
      %s463 = scalar_lea.vmem %s8, %s462
      %p464 = scmp.lt.s32.totalorder %s20, 2
      %s465 = scalar_select %p464, %s20, 2
      %s466 = smul.addr %s465, 2
      %s467 = smul.addr %s466, 8
      %s468 = scalar_lea.vmem %s9, %s467
      %v470 = vld [vmem:[%s431] sm:$0xff]
      %v471 = vld [vmem:[%s431 + $0x8] sm:$0xff]
      %v472 = vpack.c.bf16 %v471, %v470
      %v473 = vld [vmem:[%s436] sm:$0xff]
      %v474 = vld [vmem:[%s436 + $0x8] sm:$0xff]
      %v475 = vld [vmem:[%s436 + $0x10] sm:$0xff]
      %v476 = vld [vmem:[%s436 + $0x18] sm:$0xff]
      %v477 = vpack.c.bf16 %v474, %v473
      %v478 = vpack.c.bf16 %v476, %v475
      %v479 = vld [vmem:[%s439] sm:$0x1]
      %v481 = vlaneseq
      %v482 = vshrl.u32 %v481, 7
      %v483 = vsub.s32 0, %v482
      %v484 = vrot.slane %v479, %v483
      %vm486 = vcmask 261120
      %v488 = vsel %vm486, %v472, 0
      %490 = vmatprep.subr.bf16.mxu0 0
      %491 = vmatpush1.bf16.msra.mxu0 0
      %492 = vmatprep.subr.bf16.mxu0 0
      %493 = vmatpush1.bf16.msra.mxu0 0
      %494 = vmatprep.subr.bf16.mxu0 0
      %495 = vmatpush1.bf16.msra.mxu0 0
      %496 = vmatprep.subr.bf16.mxu0 0
      %497 = vmatpush1.bf16.msra.mxu0 0
      %498 = vmatprep.subr.bf16.mxu0 0
      %499 = vmatpush1.bf16.msra.mxu0 0
      %500 = vmatprep.subr.bf16.mxu0 0
      %501 = vmatpush1.bf16.msra.mxu0 0
      %502 = vmatprep.subr.bf16.mxu0 0
      %503 = vmatpush1.bf16.msra.mxu0 %v478
      %504 = vmatprep.subr.bf16.mxu0 0
      %505 = vmatpush1.bf16.msra.mxu0 %v477
      %506 = vmatprep.subr.bf16.mxu0 0
      %507 = vmatpush2.bf16.msra.mxu0 0
      %508 = vmatprep.subr.bf16.mxu0 0
      %509 = vmatpush2.bf16.msra.mxu0 0
      %510 = vmatprep.subr.bf16.mxu0 0
      %511 = vmatpush2.bf16.msra.mxu0 0
      %512 = vmatprep.subr.bf16.mxu0 0
      %513 = vmatpush2.bf16.msra.mxu0 0
      %514 = vmatprep.subr.bf16.mxu0 0
      %515 = vmatpush2.bf16.msra.mxu0 0
      %516 = vmatprep.subr.bf16.mxu0 0
      %517 = vmatpush2.bf16.msra.mxu0 0
      %518 = vmatprep.subr.bf16.mxu0 0
      %519 = vmatpush2.bf16.msra.mxu0 0
      %520 = vmatprep.subr.bf16.mxu0 0
      %521 = vmatpush2.bf16.msra.mxu0 0
      %522 = vmatprep.mubr.bf16.mxu0 0
      %523 = vmatmul.mubr.bf16.gmra.mxu0 %v488
      %v524 = vpop.f32.mrf.mxu0
      %v525 = vadd.f32 %v484, %v524
      %v526 = vpop.f32.mrf.mxu0
      %v527 = vpop.f32.mrf.mxu0
      %v528 = vadd.f32 %v484, %v527
      %v529 = vpop.f32.mrf.mxu0
      %530 = vdwg.mxu0
      %v531 = vld [vmem:[%s444] sm:$0xff]
      %v532 = vld [vmem:[%s444 + $0x8] sm:$0xff]
      %v533 = vld [vmem:[%s444 + $0x10] sm:$0xff]
      %v534 = vld [vmem:[%s444 + $0x18] sm:$0xff]
      %v535 = vpack.c.bf16 %v532, %v531
      %v536 = vpack.c.bf16 %v534, %v533
      %v537 = vld [vmem:[%s447] sm:$0x1]
      %v539 = vlaneseq
      %v540 = vshrl.u32 %v539, 7
      %v541 = vsub.s32 0, %v540
      %v542 = vrot.slane %v537, %v541
      %544 = vmatprep.subr.bf16.mxu0 0
      %545 = vmatpush1.bf16.msra.mxu0 0
      %546 = vmatprep.subr.bf16.mxu0 0
      %547 = vmatpush1.bf16.msra.mxu0 0
      %548 = vmatprep.subr.bf16.mxu0 0
      %549 = vmatpush1.bf16.msra.mxu0 0
      %550 = vmatprep.subr.bf16.mxu0 0
      %551 = vmatpush1.bf16.msra.mxu0 0
      %552 = vmatprep.subr.bf16.mxu0 0
      %553 = vmatpush1.bf16.msra.mxu0 0
      %554 = vmatprep.subr.bf16.mxu0 0
      %555 = vmatpush1.bf16.msra.mxu0 0
      %556 = vmatprep.subr.bf16.mxu0 0
      %557 = vmatpush1.bf16.msra.mxu0 %v536
      %558 = vmatprep.subr.bf16.mxu0 0
      %559 = vmatpush1.bf16.msra.mxu0 %v535
      %560 = vmatprep.subr.bf16.mxu0 0
      %561 = vmatpush2.bf16.msra.mxu0 0
      %562 = vmatprep.subr.bf16.mxu0 0
      %563 = vmatpush2.bf16.msra.mxu0 0
      %564 = vmatprep.subr.bf16.mxu0 0
      %565 = vmatpush2.bf16.msra.mxu0 0
      %566 = vmatprep.subr.bf16.mxu0 0
      %567 = vmatpush2.bf16.msra.mxu0 0
      %568 = vmatprep.subr.bf16.mxu0 0
      %569 = vmatpush2.bf16.msra.mxu0 0
      %570 = vmatprep.subr.bf16.mxu0 0
      %571 = vmatpush2.bf16.msra.mxu0 0
      %572 = vmatprep.subr.bf16.mxu0 0
      %573 = vmatpush2.bf16.msra.mxu0 0
      %574 = vmatprep.subr.bf16.mxu0 0
      %575 = vmatpush2.bf16.msra.mxu0 0
      %576 = vmatprep.mubr.bf16.mxu0 0
      %577 = vmatmul.mubr.bf16.gmra.mxu0 %v488
      %v578 = vpop.f32.mrf.mxu0
      %v579 = vadd.f32 %v542, %v578
      %v580 = vpop.f32.mrf.mxu0
      %v581 = vpop.f32.mrf.mxu0
      %v582 = vadd.f32 %v542, %v581
      %v583 = vpop.f32.mrf.mxu0
      %584 = vdwg.mxu0
      %v585 = vmax.f32 %v579, 0.0
      %v586 = vmax.f32 %v582, 0.0
      %v587 = vpack.c.bf16 %v586, %v585
      %v588 = vld [vmem:[%s452] sm:$0xff]
      %v589 = vld [vmem:[%s452 + $0x8] sm:$0xff]
      %v590 = vld [vmem:[%s452 + $0x10] sm:$0xff]
      %v591 = vld [vmem:[%s452 + $0x18] sm:$0xff]
      %v592 = vpack.c.bf16 %v589, %v588
      %v593 = vpack.c.bf16 %v591, %v590
      %v594 = vld [vmem:[%s455] sm:$0x1]
      %v596 = vlaneseq
      %v597 = vshrl.u32 %v596, 7
      %v598 = vsub.s32 0, %v597
      %v599 = vrot.slane %v594, %v598
      %v602 = vsel %vm486, %v587, 0
      %604 = vmatprep.subr.bf16.mxu0 0
      %605 = vmatpush1.bf16.msra.mxu0 0
      %606 = vmatprep.subr.bf16.mxu0 0
      %607 = vmatpush1.bf16.msra.mxu0 0
      %608 = vmatprep.subr.bf16.mxu0 0
      %609 = vmatpush1.bf16.msra.mxu0 0
      %610 = vmatprep.subr.bf16.mxu0 0
      %611 = vmatpush1.bf16.msra.mxu0 0
      %612 = vmatprep.subr.bf16.mxu0 0
      %613 = vmatpush1.bf16.msra.mxu0 0
      %614 = vmatprep.subr.bf16.mxu0 0
      %615 = vmatpush1.bf16.msra.mxu0 0
      %616 = vmatprep.subr.bf16.mxu0 0
      %617 = vmatpush1.bf16.msra.mxu0 %v593
      %618 = vmatprep.subr.bf16.mxu0 0
      %619 = vmatpush1.bf16.msra.mxu0 %v592
      %620 = vmatprep.subr.bf16.mxu0 0
      %621 = vmatpush2.bf16.msra.mxu0 0
      %622 = vmatprep.subr.bf16.mxu0 0
      %623 = vmatpush2.bf16.msra.mxu0 0
      %624 = vmatprep.subr.bf16.mxu0 0
      %625 = vmatpush2.bf16.msra.mxu0 0
      %626 = vmatprep.subr.bf16.mxu0 0
      %627 = vmatpush2.bf16.msra.mxu0 0
      %628 = vmatprep.subr.bf16.mxu0 0
      %629 = vmatpush2.bf16.msra.mxu0 0
      %630 = vmatprep.subr.bf16.mxu0 0
      %631 = vmatpush2.bf16.msra.mxu0 0
      %632 = vmatprep.subr.bf16.mxu0 0
      %633 = vmatpush2.bf16.msra.mxu0 0
      %634 = vmatprep.subr.bf16.mxu0 0
      %635 = vmatpush2.bf16.msra.mxu0 0
      %636 = vmatprep.mubr.bf16.mxu0 0
      %637 = vmatmul.mubr.bf16.gmra.mxu0 %v602
      %v638 = vpop.f32.mrf.mxu0
      %v639 = vadd.f32 %v599, %v638
      %v640 = vpop.f32.mrf.mxu0
      %v641 = vpop.f32.mrf.mxu0
      %v642 = vadd.f32 %v599, %v641
      %v643 = vpop.f32.mrf.mxu0
      %644 = vdwg.mxu0
      %v645 = vmax.f32 %v639, 0.0
      %v646 = vmax.f32 %v642, 0.0
      %v647 = vpack.c.bf16 %v646, %v645
      %v648 = vld [vmem:[%s460] sm:$0xff]
      %v649 = vld [vmem:[%s460 + $0x8] sm:$0xff]
      %v650 = vld [vmem:[%s460 + $0x10] sm:$0xff]
      %v651 = vld [vmem:[%s460 + $0x18] sm:$0xff]
      %v652 = vpack.c.bf16 %v649, %v648
      %v653 = vpack.c.bf16 %v651, %v650
      %v654 = vld [vmem:[%s463] sm:$0x1]
      %v656 = vlaneseq
      %v657 = vshrl.u32 %v656, 7
      %v658 = vsub.s32 0, %v657
      %v659 = vrot.slane %v654, %v658
      %v662 = vsel %vm486, %v647, 0
      %664 = vmatprep.subr.bf16.mxu0 0
      %665 = vmatpush1.bf16.msra.mxu0 0
      %666 = vmatprep.subr.bf16.mxu0 0
      %667 = vmatpush1.bf16.msra.mxu0 0
      %668 = vmatprep.subr.bf16.mxu0 0
      %669 = vmatpush1.bf16.msra.mxu0 0
      %670 = vmatprep.subr.bf16.mxu0 0
      %671 = vmatpush1.bf16.msra.mxu0 0
      %672 = vmatprep.subr.bf16.mxu0 0
      %673 = vmatpush1.bf16.msra.mxu0 0
      %674 = vmatprep.subr.bf16.mxu0 0
      %675 = vmatpush1.bf16.msra.mxu0 0
      %676 = vmatprep.subr.bf16.mxu0 0
      %677 = vmatpush1.bf16.msra.mxu0 %v653
      %678 = vmatprep.subr.bf16.mxu0 0
      %679 = vmatpush1.bf16.msra.mxu0 %v652
      %680 = vmatprep.subr.bf16.mxu0 0
      %681 = vmatpush2.bf16.msra.mxu0 0
      %682 = vmatprep.subr.bf16.mxu0 0
      %683 = vmatpush2.bf16.msra.mxu0 0
      %684 = vmatprep.subr.bf16.mxu0 0
      %685 = vmatpush2.bf16.msra.mxu0 0
      %686 = vmatprep.subr.bf16.mxu0 0
      %687 = vmatpush2.bf16.msra.mxu0 0
      %688 = vmatprep.subr.bf16.mxu0 0
      %689 = vmatpush2.bf16.msra.mxu0 0
      %690 = vmatprep.subr.bf16.mxu0 0
      %691 = vmatpush2.bf16.msra.mxu0 0
      %692 = vmatprep.subr.bf16.mxu0 0
      %693 = vmatpush2.bf16.msra.mxu0 0
      %694 = vmatprep.subr.bf16.mxu0 0
      %695 = vmatpush2.bf16.msra.mxu0 0
      %696 = vmatprep.mubr.bf16.mxu0 0
      %697 = vmatmul.mubr.bf16.gmra.mxu0 %v662
      %v698 = vpop.f32.mrf.mxu0
      %v699 = vadd.f32 %v659, %v698
      %v700 = vpop.f32.mrf.mxu0
      %v701 = vpop.f32.mrf.mxu0
      %v702 = vadd.f32 %v659, %v701
      %v703 = vpop.f32.mrf.mxu0
      %704 = vdwg.mxu0
      %v705 = vxor.u32 %v699, 2147483648
      %v706 = vxor.u32 %v702, 2147483648
      %v707 = vmul.f32 %v705, 1.442695
      %v708 = vpow.pop %v707
      %v709 = vmul.f32 %v706, 1.442695
      %v710 = vpow.pop %v709
      %v711 = vadd.f32 %v708, 1.0
      %v712 = vadd.f32 %v710, 1.0
      %v713 = vrcp.pop %v711
      %v714 = vmul.f32 1.0, %v713
      %v715 = vrcp.pop %v712
      %v716 = vmul.f32 1.0, %v715
      %719 = vrot.lane.b32.xlu0 %v714, 64
      %v720 = vpop.permute.xlu0 %719
      %721 = vrot.lane.b32.xlu0 %v716, 64
      %v722 = vpop.permute.xlu0 %721
      %vm725 = vcmask 523264
      %v726 = vsel %vm725, %v525, %v720
      %v727 = vsel %vm725, %v528, %v722
      %728 = vst [vmem:[%s468] sm:$0xff] %v726
      %729 = vst [vmem:[%s468 + $0x8] sm:$0xff] %v727
      %p730 = scmp.lt.s32.totalorder %s20, 2
      %s731 = scalar_select %p730, %s20, 2
      %s732 = smul.addr %s731, 2
      %s733 = smul.addr %s732, 8
      %s734 = scalar_lea.vmem %s9, %s733
      // Predicated region
      $region57: #{reltr_forward.5} parent=55 // pred_check
        %p735 = pneg %p272
      $region58: #{reltr_forward.5} parent=55 // pred_check_branch
        %737 = sbr.rel (%p735) target = $region60
      $region59: #{reltr_forward.5} parent=55 // pred_region
        _
      $region60: #{reltr_forward.5} parent=55 // pred_fallthru
        _
    $region56: #{reltr_forward.5} parent=5 // pred_fallthru
      _
    %p738 = scmp.le.s32.totalorder 2, %s15
    // Predicated region
    $region61: #{reltr_forward.5} parent=5 // pred_check
      %p739 = pneg %p738
    $region62: #{reltr_forward.5} parent=5 // pred_check_branch
      %741 = sbr.rel (%p739) target = $region64
    $region63: #{reltr_forward.5} parent=5 // pred_region
      %s742 = ssub.s32 %s15, 2
      // Predicated region
      $region65: #{reltr_forward.5} parent=63 // pred_check
        %p743 = pneg %p278
      $region66: #{reltr_forward.5} parent=63 // pred_check_branch
        %745 = sbr.rel (%p743) target = $region68
      $region67: #{reltr_forward.5} parent=63 // pred_region
        %p746 = scmp.lt.s32.totalorder %s21, 2
        %s747 = scalar_select %p746, %s21, 2
        %s748 = smul.addr %s747, 2
        %s749 = smul.addr %s748, 8
        %s750 = scalar_lea.vmem %s9, %s749
      $region68: #{reltr_forward.5} parent=63 // pred_fallthru
        _
    $region64: #{reltr_forward.5} parent=5 // pred_fallthru
      _
  $region6: #{reltr_forward.5} parent=0 // loop_footer
    %s19 = sadd.s32 1, %s15
  $region7: #{reltr_forward.5} parent=0 // loop_footer_branch
    %14 = sbr.rel target = $region3
  $region8: #{reltr_forward.5} parent=0 // loop_exit
    _

</llo_original>
